<compile_context>
chip_gen: v6e
topology: v6e:2x2x1
jax: 0.10.0
libtpu: 0.0.40
codegen_flags: <defaults>
</compile_context>

<pallas_src>
import jax
import jax.numpy as jnp
from jax.experimental import pallas as pl
from jax.experimental.pallas import tpu as pltpu

# ----------------------------- model hyper-params (small) -------------------
B = 2                      # scenes per batch
N_OBS = 3                  # observations per scene
VIEW_H, VIEW_W = 8, 16     # view_size
HW = VIEW_H * VIEW_W       # 128  -> lane aligned
CSIZE = 32                 # csize
NWRD = 128                 # n_wrd_cells (small, lane aligned)
VSIZE = 12                 # pose vector length
DOWN = 2                   # down_size
IMG_H, IMG_W = VIEW_H * DOWN, VIEW_W * DOWN
IMG_C = 3
C_PAD = 8                  # encoder channels zero-padded to the f32 sublane tile
DTYPE = jnp.float32


# ----------------------------- Pallas kernel ---------------------------------
def _softmax_lastdim(x):
    """Row softmax with the divide replaced by an EUP approximate reciprocal."""
    m = jnp.max(x, axis=-1, keepdims=True)
    e = jnp.exp(x - m)
    return e * pl.reciprocal(jnp.sum(e, axis=-1, keepdims=True), approx=True)


def smn_fused_kernel(pooled_ref, wprojT_ref, base_ref, baseT_ref,
                     oproj_ref, qprojT_ref, out_ref):
    """Fused SMN forward core for the whole (tiny) batch, single invocation.

    pooled_ref : (B*N_OBS, C_PAD, HW) f32  pooled encoder features (ch zero-padded)
    wprojT_ref : (CSIZE, C_PAD)       f32  encoder 1x1 projection (transposed, padded)
    base_ref   : (HW, NWRD)           f32  grid3 @ wcode_scaled^T
    baseT_ref  : (NWRD, HW)           f32  wcode_scaled @ grid3^T
    oproj_ref  : (B*N_OBS, NWRD)      f32  per-observation pose projection
    qprojT_ref : (NWRD, B)            f32  query pose projection (transposed)
    out_ref    : (B, CSIZE, HW)       f32  sigmoid(view_cell_query)
    """
    wT = wprojT_ref[...]
    base = base_ref[...]
    baseT = baseT_ref[...]
    oproj = oproj_ref[...]
    qprojT = qprojT_ref[...]

    for b in range(B):                       # static unroll, trip counts 2 / 3
        scene = jnp.zeros((CSIZE, NWRD), jnp.float32)
        for o in range(N_OBS):
            idx = b * N_OBS + o
            # encoder 1x1 projection (stand-in): (CSIZE, C_PAD) @ (C_PAD, HW)
            vc = jnp.dot(wT, pooled_ref[idx], preferred_element_type=jnp.float32)
            # per-observation routing matrix, built in-kernel (softmax over word cells)
            r_o = _softmax_lastdim(base - oproj[idx:idx + 1, :])      # (HW, NWRD)
            # scene fusion: sum_o vc[o] @ R_obs[o]  — bf16 MXU push, f32 accumulate
            scene = scene + jnp.dot(vc.astype(jnp.bfloat16),
                                    r_o.astype(jnp.bfloat16),
                                    preferred_element_type=jnp.float32)
        # query routing matrix (softmax over view pixels)
        r_q = _softmax_lastdim(baseT - qprojT[:, b:b + 1])            # (NWRD, HW)
        q = jnp.dot(scene.astype(jnp.bfloat16), r_q.astype(jnp.bfloat16),
                    preferred_element_type=jnp.float32)               # (CSIZE, HW)
        # sigmoid = 1 / (1 + exp(-q)) : exp on EUP, approx reciprocal instead of divide
        out_ref[b] = pl.reciprocal(1.0 + jnp.exp(-q), approx=True).astype(out_ref.dtype)


def smn_routed_query(pooled, wprojT, base, baseT, oproj, qprojT):
    flops = B * (N_OBS * 2 * CSIZE * C_PAD * HW        # encoder projection
                 + N_OBS * 2 * CSIZE * HW * NWRD       # scene fusion matmuls
                 + 2 * CSIZE * NWRD * HW)              # query matmul
    transcendentals = B * ((N_OBS + 1) * HW * NWRD + CSIZE * HW)
    in_bytes = sum(int(a.size) * a.dtype.itemsize
                   for a in (pooled, wprojT, base, baseT, oproj, qprojT))
    out_bytes = B * CSIZE * HW * 4

    return pl.pallas_call(
        smn_fused_kernel,
        out_shape=jax.ShapeDtypeStruct((B, CSIZE, HW), DTYPE),
        grid=(1,),                                     # single invocation: whole batch in VMEM
        in_specs=[
            pl.BlockSpec((B * N_OBS, C_PAD, HW), lambda i: (0, 0, 0)),
            pl.BlockSpec((CSIZE, C_PAD), lambda i: (0, 0)),
            pl.BlockSpec((HW, NWRD), lambda i: (0, 0)),
            pl.BlockSpec((NWRD, HW), lambda i: (0, 0)),
            pl.BlockSpec((B * N_OBS, NWRD), lambda i: (0, 0)),
            pl.BlockSpec((NWRD, B), lambda i: (0, 0)),
        ],
        out_specs=pl.BlockSpec((B, CSIZE, HW), lambda i: (0, 0, 0)),
        cost_estimate=pl.CostEstimate(flops=flops, transcendentals=transcendentals,
                                      bytes_accessed=in_bytes + out_bytes),
        compiler_params=pltpu.CompilerParams(dimension_semantics=("arbitrary",)),
    )(pooled, wprojT, base, baseT, oproj, qprojT)


# ----------------------------- plain-JAX pre-processing (tiny, XLA-fused) ----
def pose_adjust(v, vq):
    """SMN.forward no_grad block: v[:, {3,7,11}] -= vq_tile[:, {3,7,11}]; vq[:, {3,7,11}] = 0."""
    cols = jnp.arange(VSIZE)
    mask = (cols == 3) | (cols == 7) | (cols == 11)
    v3 = v.reshape(B, N_OBS, VSIZE)
    v_rel = (v3 - jnp.where(mask, vq[:, None, :], 0.0)).reshape(B * N_OBS, VSIZE)
    vq0 = jnp.where(mask, 0.0, vq)
    return v_rel, vq0


@jax.jit
def smn_forward(x, v, xq, vq, params):
    # 1) pose preprocessing (plain JAX; ~300 B of data)
    v_rel, vq0 = pose_adjust(v, vq)
    # 2) world-code scaling (optimize_scale=True branch)
    wcode_scaled = params['wcode'] * jnp.exp(params['wscale'])            # (NWRD, 3)
    # 3) encoder front half: avg-pool(down_size) + channel zero-pad to C_PAD.
    # TODO(synk): encoder.EncoderNetworkSA source not provided; pooling is a deterministic stand-in.
    bn = x.shape[0]
    pooled = x.reshape(bn, IMG_C, VIEW_H, DOWN, VIEW_W, DOWN).mean(axis=(3, 5))
    pooled = pooled.reshape(bn, IMG_C, HW)
    pooled = jnp.pad(pooled, ((0, 0), (0, C_PAD - IMG_C), (0, 0)))        # (B*N_OBS, C_PAD, HW)
    wprojT = jnp.pad(params['w_proj'].T, ((0, 0), (0, C_PAD - IMG_C)))    # (CSIZE, C_PAD)
    # 4) routing ingredients (tiny matmuls, one XLA fusion).
    # TODO(synk): smc.MemoryController routing network source not provided; deterministic
    # pose-conditioned softmax routing stand-in, conditioned on translation cols (3,7,11).
    grid3 = params['grid3']                                               # (HW, 3)
    base = grid3 @ wcode_scaled.T                                         # (HW, NWRD)
    baseT = wcode_scaled @ grid3.T                                        # (NWRD, HW)
    oproj = v_rel[:, 3::4] @ wcode_scaled.T                               # (B*N_OBS, NWRD)
    qprojT = wcode_scaled @ vq0[:, 3::4].T                                # (NWRD, B)
    # 5) fused Pallas kernel: encoder projection + routing softmaxes + scene fusion
    #    (forward_mat_merge) + query routing + sigmoid; no large intermediates in HBM.
    view_cell_query = smn_routed_query(pooled.astype(DTYPE), wprojT.astype(DTYPE),
                                       base.astype(DTYPE), baseT.astype(DTYPE),
                                       oproj.astype(DTYPE), qprojT.astype(DTYPE))
    # TODO(synk): generator.GeneratorNetwork (DRAW) and model.DiffusionModel.get_loss
    # sources not provided; x_query / kl / diff_loss are not reproduced here.
    return view_cell_query


# ----------------------------- main ------------------------------------------
if __name__ == "__main__":
    key = jax.random.PRNGKey(0)
    kx, kv, kxq, kvq, kwc, kwp = jax.random.split(key, 6)

    x = jax.random.normal(kx, (B * N_OBS, IMG_C, IMG_H, IMG_W), dtype=DTYPE)
    v = jax.random.normal(kv, (B * N_OBS, VSIZE), dtype=DTYPE)
    xq = jax.random.normal(kxq, (B, IMG_C, IMG_H, IMG_W), dtype=DTYPE)
    vq = jax.random.normal(kvq, (B, VSIZE), dtype=DTYPE)

    # parameters (deterministic, mirroring SMN.__init__ / sample_wcode)
    wscale = jnp.full((1, 3), 0.1, dtype=DTYPE)                      # nn.Parameter([[0.1,0.1,0.1]])
    wcode = jax.random.uniform(kwc, (NWRD, 3), dtype=DTYPE) * 2 - 1  # rand*2-1 per coordinate
    w_proj = jax.random.normal(kwp, (IMG_C, CSIZE), dtype=DTYPE) * 0.1
    yy, xx = jnp.meshgrid(jnp.linspace(-1, 1, VIEW_H), jnp.linspace(-1, 1, VIEW_W), indexing='ij')
    grid3 = jnp.stack([xx.ravel(), yy.ravel(), jnp.zeros(HW)], axis=-1).astype(DTYPE)

    params = {'wscale': wscale, 'wcode': wcode, 'w_proj': w_proj, 'grid3': grid3}

    out = smn_forward(x, v, xq, vq, params)
    jax.block_until_ready(out)
    assert out.shape == (B, CSIZE, HW)
    print("KERNEL_OK")
</pallas_src>

<mosaic_0001>
module attributes {stable_mosaic.version = 11 : i64} {
  func.func @smn_fused_kernel(%arg0: i32, %arg1: memref<6x8x128xf32, #tpu.memory_space<vmem>>, %arg2: memref<32x8xf32, #tpu.memory_space<vmem>>, %arg3: memref<128x128xf32, #tpu.memory_space<vmem>>, %arg4: memref<128x128xf32, #tpu.memory_space<vmem>>, %arg5: memref<6x128xf32, #tpu.memory_space<vmem>>, %arg6: memref<128x2xf32, #tpu.memory_space<vmem>>, %arg7: memref<2x32x128xf32, #tpu.memory_space<vmem>>) attributes {dimension_semantics = [#tpu.dimension_semantics<arbitrary>], iteration_bounds = array<i64: 1>, scalar_prefetch = 0 : i64, scratch_operands = 0 : i64, tpu.core_type = #tpu.core_type<tc>, window_params = [{pipeline_mode = #tpu.pipeline_mode<synchronous>, transform_indices = @transform_0, window_bounds = array<i64: 6, 8, 128>}, {pipeline_mode = #tpu.pipeline_mode<synchronous>, transform_indices = @transform_1, window_bounds = array<i64: 32, 8>}, {pipeline_mode = #tpu.pipeline_mode<synchronous>, transform_indices = @transform_2, window_bounds = array<i64: 128, 128>}, {pipeline_mode = #tpu.pipeline_mode<synchronous>, transform_indices = @transform_3, window_bounds = array<i64: 128, 128>}, {pipeline_mode = #tpu.pipeline_mode<synchronous>, transform_indices = @transform_4, window_bounds = array<i64: 6, 128>}, {pipeline_mode = #tpu.pipeline_mode<synchronous>, transform_indices = @transform_5, window_bounds = array<i64: 128, 2>}, {pipeline_mode = #tpu.pipeline_mode<synchronous>, transform_indices = @transform_6, window_bounds = array<i64: 2, 32, 128>}]} {
    %c0 = arith.constant 0 : index
    %c0_0 = arith.constant 0 : index
    %0 = vector.load %arg2[%c0, %c0_0] : memref<32x8xf32, #tpu.memory_space<vmem>>, vector<32x8xf32>
    %c0_1 = arith.constant 0 : index
    %c0_2 = arith.constant 0 : index
    %1 = vector.load %arg3[%c0_1, %c0_2] : memref<128x128xf32, #tpu.memory_space<vmem>>, vector<128x128xf32>
    %c0_3 = arith.constant 0 : index
    %c0_4 = arith.constant 0 : index
    %2 = vector.load %arg4[%c0_3, %c0_4] : memref<128x128xf32, #tpu.memory_space<vmem>>, vector<128x128xf32>
    %c0_5 = arith.constant 0 : index
    %c0_6 = arith.constant 0 : index
    %3 = vector.load %arg5[%c0_5, %c0_6] : memref<6x128xf32, #tpu.memory_space<vmem>>, vector<6x128xf32>
    %c0_7 = arith.constant 0 : index
    %c0_8 = arith.constant 0 : index
    %4 = vector.load %arg6[%c0_7, %c0_8] : memref<128x2xf32, #tpu.memory_space<vmem>>, vector<128x2xf32>
    %cst = arith.constant 0.000000e+00 : f32
    %5 = vector.broadcast %cst : f32 to vector<32x128xf32>
    %c0_9 = arith.constant 0 : index
    %c0_10 = arith.constant 0 : index
    %c0_11 = arith.constant 0 : index
    %6 = vector.load %arg1[%c0_9, %c0_10, %c0_11] : memref<6x8x128xf32, #tpu.memory_space<vmem>>, vector<1x8x128xf32>
    %7 = vector.shape_cast %6 : vector<1x8x128xf32> to vector<8x128xf32>
    %cst_12 = arith.constant dense<0.000000e+00> : vector<32x128xf32>
    %8 = tpu.matmul %0, %7, %cst_12 {dimension_numbers = #tpu.dot_dimension_numbers<[1], [0], [0], [1], [0, 0, 1, 1], [], []>} : vector<32x8xf32>, vector<8x128xf32>, vector<32x128xf32> -> vector<32x128xf32>
    %9 = vector.extract_strided_slice %3 {offsets = [0, 0], sizes = [1, 128], strides = [1, 1]} : vector<6x128xf32> to vector<1x128xf32>
    %10 = vector.broadcast %9 : vector<1x128xf32> to vector<128x128xf32>
    %11 = arith.subf %1, %10 : vector<128x128xf32>
    %cst_13 = arith.constant dense<0xFF800000> : vector<128xf32>
    %12 = vector.multi_reduction <maximumf>, %11, %cst_13 [1] : vector<128x128xf32> to vector<128xf32>
    %13 = vector.shape_cast %12 : vector<128xf32> to vector<128x1xf32>
    %14 = vector.broadcast %13 : vector<128x1xf32> to vector<128x128xf32>
    %15 = arith.subf %11, %14 : vector<128x128xf32>
    %16 = math.exp %15 : vector<128x128xf32>
    %cst_14 = arith.constant dense<0.000000e+00> : vector<128xf32>
    %17 = vector.multi_reduction <add>, %16, %cst_14 [1] : vector<128x128xf32> to vector<128xf32>
    %18 = vector.shape_cast %17 : vector<128xf32> to vector<128x1xf32>
    %19 = tpu.reciprocal %18 {approx = true} : vector<128x1xf32> -> vector<128x1xf32>
    %20 = vector.broadcast %19 : vector<128x1xf32> to vector<128x128xf32>
    %21 = arith.mulf %16, %20 : vector<128x128xf32>
    %22 = arith.truncf %8 : vector<32x128xf32> to vector<32x128xbf16>
    %23 = arith.truncf %21 : vector<128x128xf32> to vector<128x128xbf16>
    %cst_15 = arith.constant dense<0.000000e+00> : vector<32x128xf32>
    %24 = tpu.matmul %22, %23, %cst_15 {dimension_numbers = #tpu.dot_dimension_numbers<[1], [0], [0], [1], [0, 0, 1, 1], [], []>} : vector<32x128xbf16>, vector<128x128xbf16>, vector<32x128xf32> -> vector<32x128xf32>
    %25 = arith.addf %5, %24 : vector<32x128xf32>
    %c1 = arith.constant 1 : index
    %c0_16 = arith.constant 0 : index
    %c0_17 = arith.constant 0 : index
    %26 = vector.load %arg1[%c1, %c0_16, %c0_17] : memref<6x8x128xf32, #tpu.memory_space<vmem>>, vector<1x8x128xf32>
    %27 = vector.shape_cast %26 : vector<1x8x128xf32> to vector<8x128xf32>
    %cst_18 = arith.constant dense<0.000000e+00> : vector<32x128xf32>
    %28 = tpu.matmul %0, %27, %cst_18 {dimension_numbers = #tpu.dot_dimension_numbers<[1], [0], [0], [1], [0, 0, 1, 1], [], []>} : vector<32x8xf32>, vector<8x128xf32>, vector<32x128xf32> -> vector<32x128xf32>
    %29 = vector.extract_strided_slice %3 {offsets = [1, 0], sizes = [1, 128], strides = [1, 1]} : vector<6x128xf32> to vector<1x128xf32>
    %30 = vector.broadcast %29 : vector<1x128xf32> to vector<128x128xf32>
    %31 = arith.subf %1, %30 : vector<128x128xf32>
    %cst_19 = arith.constant dense<0xFF800000> : vector<128xf32>
    %32 = vector.multi_reduction <maximumf>, %31, %cst_19 [1] : vector<128x128xf32> to vector<128xf32>
    %33 = vector.shape_cast %32 : vector<128xf32> to vector<128x1xf32>
    %34 = vector.broadcast %33 : vector<128x1xf32> to vector<128x128xf32>
    %35 = arith.subf %31, %34 : vector<128x128xf32>
    %36 = math.exp %35 : vector<128x128xf32>
    %cst_20 = arith.constant dense<0.000000e+00> : vector<128xf32>
    %37 = vector.multi_reduction <add>, %36, %cst_20 [1] : vector<128x128xf32> to vector<128xf32>
    %38 = vector.shape_cast %37 : vector<128xf32> to vector<128x1xf32>
    %39 = tpu.reciprocal %38 {approx = true} : vector<128x1xf32> -> vector<128x1xf32>
    %40 = vector.broadcast %39 : vector<128x1xf32> to vector<128x128xf32>
    %41 = arith.mulf %36, %40 : vector<128x128xf32>
    %42 = arith.truncf %28 : vector<32x128xf32> to vector<32x128xbf16>
    %43 = arith.truncf %41 : vector<128x128xf32> to vector<128x128xbf16>
    %cst_21 = arith.constant dense<0.000000e+00> : vector<32x128xf32>
    %44 = tpu.matmul %42, %43, %cst_21 {dimension_numbers = #tpu.dot_dimension_numbers<[1], [0], [0], [1], [0, 0, 1, 1], [], []>} : vector<32x128xbf16>, vector<128x128xbf16>, vector<32x128xf32> -> vector<32x128xf32>
    %45 = arith.addf %25, %44 : vector<32x128xf32>
    %c2 = arith.constant 2 : index
    %c0_22 = arith.constant 0 : index
    %c0_23 = arith.constant 0 : index
    %46 = vector.load %arg1[%c2, %c0_22, %c0_23] : memref<6x8x128xf32, #tpu.memory_space<vmem>>, vector<1x8x128xf32>
    %47 = vector.shape_cast %46 : vector<1x8x128xf32> to vector<8x128xf32>
    %cst_24 = arith.constant dense<0.000000e+00> : vector<32x128xf32>
    %48 = tpu.matmul %0, %47, %cst_24 {dimension_numbers = #tpu.dot_dimension_numbers<[1], [0], [0], [1], [0, 0, 1, 1], [], []>} : vector<32x8xf32>, vector<8x128xf32>, vector<32x128xf32> -> vector<32x128xf32>
    %49 = vector.extract_strided_slice %3 {offsets = [2, 0], sizes = [1, 128], strides = [1, 1]} : vector<6x128xf32> to vector<1x128xf32>
    %50 = vector.broadcast %49 : vector<1x128xf32> to vector<128x128xf32>
    %51 = arith.subf %1, %50 : vector<128x128xf32>
    %cst_25 = arith.constant dense<0xFF800000> : vector<128xf32>
    %52 = vector.multi_reduction <maximumf>, %51, %cst_25 [1] : vector<128x128xf32> to vector<128xf32>
    %53 = vector.shape_cast %52 : vector<128xf32> to vector<128x1xf32>
    %54 = vector.broadcast %53 : vector<128x1xf32> to vector<128x128xf32>
    %55 = arith.subf %51, %54 : vector<128x128xf32>
    %56 = math.exp %55 : vector<128x128xf32>
    %cst_26 = arith.constant dense<0.000000e+00> : vector<128xf32>
    %57 = vector.multi_reduction <add>, %56, %cst_26 [1] : vector<128x128xf32> to vector<128xf32>
    %58 = vector.shape_cast %57 : vector<128xf32> to vector<128x1xf32>
    %59 = tpu.reciprocal %58 {approx = true} : vector<128x1xf32> -> vector<128x1xf32>
    %60 = vector.broadcast %59 : vector<128x1xf32> to vector<128x128xf32>
    %61 = arith.mulf %56, %60 : vector<128x128xf32>
    %62 = arith.truncf %48 : vector<32x128xf32> to vector<32x128xbf16>
    %63 = arith.truncf %61 : vector<128x128xf32> to vector<128x128xbf16>
    %cst_27 = arith.constant dense<0.000000e+00> : vector<32x128xf32>
    %64 = tpu.matmul %62, %63, %cst_27 {dimension_numbers = #tpu.dot_dimension_numbers<[1], [0], [0], [1], [0, 0, 1, 1], [], []>} : vector<32x128xbf16>, vector<128x128xbf16>, vector<32x128xf32> -> vector<32x128xf32>
    %65 = arith.addf %45, %64 : vector<32x128xf32>
    %66 = vector.extract_strided_slice %4 {offsets = [0, 0], sizes = [128, 1], strides = [1, 1]} : vector<128x2xf32> to vector<128x1xf32>
    %67 = vector.broadcast %66 : vector<128x1xf32> to vector<128x128xf32>
    %68 = arith.subf %2, %67 : vector<128x128xf32>
    %cst_28 = arith.constant dense<0xFF800000> : vector<128xf32>
    %69 = vector.multi_reduction <maximumf>, %68, %cst_28 [1] : vector<128x128xf32> to vector<128xf32>
    %70 = vector.shape_cast %69 : vector<128xf32> to vector<128x1xf32>
    %71 = vector.broadcast %70 : vector<128x1xf32> to vector<128x128xf32>
    %72 = arith.subf %68, %71 : vector<128x128xf32>
    %73 = math.exp %72 : vector<128x128xf32>
    %cst_29 = arith.constant dense<0.000000e+00> : vector<128xf32>
    %74 = vector.multi_reduction <add>, %73, %cst_29 [1] : vector<128x128xf32> to vector<128xf32>
    %75 = vector.shape_cast %74 : vector<128xf32> to vector<128x1xf32>
    %76 = tpu.reciprocal %75 {approx = true} : vector<128x1xf32> -> vector<128x1xf32>
    %77 = vector.broadcast %76 : vector<128x1xf32> to vector<128x128xf32>
    %78 = arith.mulf %73, %77 : vector<128x128xf32>
    %79 = arith.truncf %65 : vector<32x128xf32> to vector<32x128xbf16>
    %80 = arith.truncf %78 : vector<128x128xf32> to vector<128x128xbf16>
    %cst_30 = arith.constant dense<0.000000e+00> : vector<32x128xf32>
    %81 = tpu.matmul %79, %80, %cst_30 {dimension_numbers = #tpu.dot_dimension_numbers<[1], [0], [0], [1], [0, 0, 1, 1], [], []>} : vector<32x128xbf16>, vector<128x128xbf16>, vector<32x128xf32> -> vector<32x128xf32>
    %cst_31 = arith.constant 0.000000e+00 : f32
    %82 = vector.broadcast %cst_31 : f32 to vector<32x128xf32>
    %83 = arith.subf %82, %81 : vector<32x128xf32>
    %84 = math.exp %83 : vector<32x128xf32>
    %cst_32 = arith.constant 1.000000e+00 : f32
    %85 = vector.broadcast %cst_32 : f32 to vector<32x128xf32>
    %86 = arith.addf %85, %84 : vector<32x128xf32>
    %87 = tpu.reciprocal %86 {approx = true} : vector<32x128xf32> -> vector<32x128xf32>
    %c0_33 = arith.constant 0 : index
    %c0_34 = arith.constant 0 : index
    %c0_35 = arith.constant 0 : index
    %88 = vector.load %arg7[%c0_33, %c0_34, %c0_35] : memref<2x32x128xf32, #tpu.memory_space<vmem>>, vector<1x32x128xf32>
    %89 = vector.shape_cast %88 : vector<1x32x128xf32> to vector<32x128xf32>
    %90 = vector.shape_cast %87 : vector<32x128xf32> to vector<1x32x128xf32>
    tpu.vector_store %arg7[%c0_33, %c0_34, %c0_35], %90 {strides = array<i32>} : memref<2x32x128xf32, #tpu.memory_space<vmem>>, vector<1x32x128xf32>,
    %cst_36 = arith.constant 0.000000e+00 : f32
    %91 = vector.broadcast %cst_36 : f32 to vector<32x128xf32>
    %c3 = arith.constant 3 : index
    %c0_37 = arith.constant 0 : index
    %c0_38 = arith.constant 0 : index
    %92 = vector.load %arg1[%c3, %c0_37, %c0_38] : memref<6x8x128xf32, #tpu.memory_space<vmem>>, vector<1x8x128xf32>
    %93 = vector.shape_cast %92 : vector<1x8x128xf32> to vector<8x128xf32>
    %cst_39 = arith.constant dense<0.000000e+00> : vector<32x128xf32>
    %94 = tpu.matmul %0, %93, %cst_39 {dimension_numbers = #tpu.dot_dimension_numbers<[1], [0], [0], [1], [0, 0, 1, 1], [], []>} : vector<32x8xf32>, vector<8x128xf32>, vector<32x128xf32> -> vector<32x128xf32>
    %95 = vector.extract_strided_slice %3 {offsets = [3, 0], sizes = [1, 128], strides = [1, 1]} : vector<6x128xf32> to vector<1x128xf32>
    %96 = vector.broadcast %95 : vector<1x128xf32> to vector<128x128xf32>
    %97 = arith.subf %1, %96 : vector<128x128xf32>
    %cst_40 = arith.constant dense<0xFF800000> : vector<128xf32>
    %98 = vector.multi_reduction <maximumf>, %97, %cst_40 [1] : vector<128x128xf32> to vector<128xf32>
    %99 = vector.shape_cast %98 : vector<128xf32> to vector<128x1xf32>
    %100 = vector.broadcast %99 : vector<128x1xf32> to vector<128x128xf32>
    %101 = arith.subf %97, %100 : vector<128x128xf32>
    %102 = math.exp %101 : vector<128x128xf32>
    %cst_41 = arith.constant dense<0.000000e+00> : vector<128xf32>
    %103 = vector.multi_reduction <add>, %102, %cst_41 [1] : vector<128x128xf32> to vector<128xf32>
    %104 = vector.shape_cast %103 : vector<128xf32> to vector<128x1xf32>
    %105 = tpu.reciprocal %104 {approx = true} : vector<128x1xf32> -> vector<128x1xf32>
    %106 = vector.broadcast %105 : vector<128x1xf32> to vector<128x128xf32>
    %107 = arith.mulf %102, %106 : vector<128x128xf32>
    %108 = arith.truncf %94 : vector<32x128xf32> to vector<32x128xbf16>
    %109 = arith.truncf %107 : vector<128x128xf32> to vector<128x128xbf16>
    %cst_42 = arith.constant dense<0.000000e+00> : vector<32x128xf32>
    %110 = tpu.matmul %108, %109, %cst_42 {dimension_numbers = #tpu.dot_dimension_numbers<[1], [0], [0], [1], [0, 0, 1, 1], [], []>} : vector<32x128xbf16>, vector<128x128xbf16>, vector<32x128xf32> -> vector<32x128xf32>
    %111 = arith.addf %91, %110 : vector<32x128xf32>
    %c4 = arith.constant 4 : index
    %c0_43 = arith.constant 0 : index
    %c0_44 = arith.constant 0 : index
    %112 = vector.load %arg1[%c4, %c0_43, %c0_44] : memref<6x8x128xf32, #tpu.memory_space<vmem>>, vector<1x8x128xf32>
    %113 = vector.shape_cast %112 : vector<1x8x128xf32> to vector<8x128xf32>
    %cst_45 = arith.constant dense<0.000000e+00> : vector<32x128xf32>
    %114 = tpu.matmul %0, %113, %cst_45 {dimension_numbers = #tpu.dot_dimension_numbers<[1], [0], [0], [1], [0, 0, 1, 1], [], []>} : vector<32x8xf32>, vector<8x128xf32>, vector<32x128xf32> -> vector<32x128xf32>
    %115 = vector.extract_strided_slice %3 {offsets = [4, 0], sizes = [1, 128], strides = [1, 1]} : vector<6x128xf32> to vector<1x128xf32>
    %116 = vector.broadcast %115 : vector<1x128xf32> to vector<128x128xf32>
    %117 = arith.subf %1, %116 : vector<128x128xf32>
    %cst_46 = arith.constant dense<0xFF800000> : vector<128xf32>
    %118 = vector.multi_reduction <maximumf>, %117, %cst_46 [1] : vector<128x128xf32> to vector<128xf32>
    %119 = vector.shape_cast %118 : vector<128xf32> to vector<128x1xf32>
    %120 = vector.broadcast %119 : vector<128x1xf32> to vector<128x128xf32>
    %121 = arith.subf %117, %120 : vector<128x128xf32>
    %122 = math.exp %121 : vector<128x128xf32>
    %cst_47 = arith.constant dense<0.000000e+00> : vector<128xf32>
    %123 = vector.multi_reduction <add>, %122, %cst_47 [1] : vector<128x128xf32> to vector<128xf32>
    %124 = vector.shape_cast %123 : vector<128xf32> to vector<128x1xf32>
    %125 = tpu.reciprocal %124 {approx = true} : vector<128x1xf32> -> vector<128x1xf32>
    %126 = vector.broadcast %125 : vector<128x1xf32> to vector<128x128xf32>
    %127 = arith.mulf %122, %126 : vector<128x128xf32>
    %128 = arith.truncf %114 : vector<32x128xf32> to vector<32x128xbf16>
    %129 = arith.truncf %127 : vector<128x128xf32> to vector<128x128xbf16>
    %cst_48 = arith.constant dense<0.000000e+00> : vector<32x128xf32>
    %130 = tpu.matmul %128, %129, %cst_48 {dimension_numbers = #tpu.dot_dimension_numbers<[1], [0], [0], [1], [0, 0, 1, 1], [], []>} : vector<32x128xbf16>, vector<128x128xbf16>, vector<32x128xf32> -> vector<32x128xf32>
    %131 = arith.addf %111, %130 : vector<32x128xf32>
    %c5 = arith.constant 5 : index
    %c0_49 = arith.constant 0 : index
    %c0_50 = arith.constant 0 : index
    %132 = vector.load %arg1[%c5, %c0_49, %c0_50] : memref<6x8x128xf32, #tpu.memory_space<vmem>>, vector<1x8x128xf32>
    %133 = vector.shape_cast %132 : vector<1x8x128xf32> to vector<8x128xf32>
    %cst_51 = arith.constant dense<0.000000e+00> : vector<32x128xf32>
    %134 = tpu.matmul %0, %133, %cst_51 {dimension_numbers = #tpu.dot_dimension_numbers<[1], [0], [0], [1], [0, 0, 1, 1], [], []>} : vector<32x8xf32>, vector<8x128xf32>, vector<32x128xf32> -> vector<32x128xf32>
    %135 = vector.extract_strided_slice %3 {offsets = [5, 0], sizes = [1, 128], strides = [1, 1]} : vector<6x128xf32> to vector<1x128xf32>
    %136 = vector.broadcast %135 : vector<1x128xf32> to vector<128x128xf32>
    %137 = arith.subf %1, %136 : vector<128x128xf32>
    %cst_52 = arith.constant dense<0xFF800000> : vector<128xf32>
    %138 = vector.multi_reduction <maximumf>, %137, %cst_52 [1] : vector<128x128xf32> to vector<128xf32>
    %139 = vector.shape_cast %138 : vector<128xf32> to vector<128x1xf32>
    %140 = vector.broadcast %139 : vector<128x1xf32> to vector<128x128xf32>
    %141 = arith.subf %137, %140 : vector<128x128xf32>
    %142 = math.exp %141 : vector<128x128xf32>
    %cst_53 = arith.constant dense<0.000000e+00> : vector<128xf32>
    %143 = vector.multi_reduction <add>, %142, %cst_53 [1] : vector<128x128xf32> to vector<128xf32>
    %144 = vector.shape_cast %143 : vector<128xf32> to vector<128x1xf32>
    %145 = tpu.reciprocal %144 {approx = true} : vector<128x1xf32> -> vector<128x1xf32>
    %146 = vector.broadcast %145 : vector<128x1xf32> to vector<128x128xf32>
    %147 = arith.mulf %142, %146 : vector<128x128xf32>
    %148 = arith.truncf %134 : vector<32x128xf32> to vector<32x128xbf16>
    %149 = arith.truncf %147 : vector<128x128xf32> to vector<128x128xbf16>
    %cst_54 = arith.constant dense<0.000000e+00> : vector<32x128xf32>
    %150 = tpu.matmul %148, %149, %cst_54 {dimension_numbers = #tpu.dot_dimension_numbers<[1], [0], [0], [1], [0, 0, 1, 1], [], []>} : vector<32x128xbf16>, vector<128x128xbf16>, vector<32x128xf32> -> vector<32x128xf32>
    %151 = arith.addf %131, %150 : vector<32x128xf32>
    %152 = vector.extract_strided_slice %4 {offsets = [0, 1], sizes = [128, 1], strides = [1, 1]} : vector<128x2xf32> to vector<128x1xf32>
    %153 = vector.broadcast %152 : vector<128x1xf32> to vector<128x128xf32>
    %154 = arith.subf %2, %153 : vector<128x128xf32>
    %cst_55 = arith.constant dense<0xFF800000> : vector<128xf32>
    %155 = vector.multi_reduction <maximumf>, %154, %cst_55 [1] : vector<128x128xf32> to vector<128xf32>
    %156 = vector.shape_cast %155 : vector<128xf32> to vector<128x1xf32>
    %157 = vector.broadcast %156 : vector<128x1xf32> to vector<128x128xf32>
    %158 = arith.subf %154, %157 : vector<128x128xf32>
    %159 = math.exp %158 : vector<128x128xf32>
    %cst_56 = arith.constant dense<0.000000e+00> : vector<128xf32>
    %160 = vector.multi_reduction <add>, %159, %cst_56 [1] : vector<128x128xf32> to vector<128xf32>
    %161 = vector.shape_cast %160 : vector<128xf32> to vector<128x1xf32>
    %162 = tpu.reciprocal %161 {approx = true} : vector<128x1xf32> -> vector<128x1xf32>
    %163 = vector.broadcast %162 : vector<128x1xf32> to vector<128x128xf32>
    %164 = arith.mulf %159, %163 : vector<128x128xf32>
    %165 = arith.truncf %151 : vector<32x128xf32> to vector<32x128xbf16>
    %166 = arith.truncf %164 : vector<128x128xf32> to vector<128x128xbf16>
    %cst_57 = arith.constant dense<0.000000e+00> : vector<32x128xf32>
    %167 = tpu.matmul %165, %166, %cst_57 {dimension_numbers = #tpu.dot_dimension_numbers<[1], [0], [0], [1], [0, 0, 1, 1], [], []>} : vector<32x128xbf16>, vector<128x128xbf16>, vector<32x128xf32> -> vector<32x128xf32>
    %cst_58 = arith.constant 0.000000e+00 : f32
    %168 = vector.broadcast %cst_58 : f32 to vector<32x128xf32>
    %169 = arith.subf %168, %167 : vector<32x128xf32>
    %170 = math.exp %169 : vector<32x128xf32>
    %cst_59 = arith.constant 1.000000e+00 : f32
    %171 = vector.broadcast %cst_59 : f32 to vector<32x128xf32>
    %172 = arith.addf %171, %170 : vector<32x128xf32>
    %173 = tpu.reciprocal %172 {approx = true} : vector<32x128xf32> -> vector<32x128xf32>
    %c1_60 = arith.constant 1 : index
    %c0_61 = arith.constant 0 : index
    %c0_62 = arith.constant 0 : index
    %174 = vector.load %arg7[%c1_60, %c0_61, %c0_62] : memref<2x32x128xf32, #tpu.memory_space<vmem>>, vector<1x32x128xf32>
    %175 = vector.shape_cast %174 : vector<1x32x128xf32> to vector<32x128xf32>
    %176 = vector.shape_cast %173 : vector<32x128xf32> to vector<1x32x128xf32>
    tpu.vector_store %arg7[%c1_60, %c0_61, %c0_62], %176 {strides = array<i32>} : memref<2x32x128xf32, #tpu.memory_space<vmem>>, vector<1x32x128xf32>,
    return
  }
  func.func @transform_0(%arg0: i32) -> (i32, i32, i32) {
    %c0_i32 = arith.constant 0 : i32
    %c0_i32_0 = arith.constant 0 : i32
    %c0_i32_1 = arith.constant 0 : i32
    %c0_i32_2 = arith.constant 0 : i32
    return %c0_i32, %c0_i32_0, %c0_i32_1 : i32, i32, i32
  }
  func.func @transform_1(%arg0: i32) -> (i32, i32) {
    %c0_i32 = arith.constant 0 : i32
    %c0_i32_0 = arith.constant 0 : i32
    %c0_i32_1 = arith.constant 0 : i32
    return %c0_i32, %c0_i32_0 : i32, i32
  }
  func.func @transform_2(%arg0: i32) -> (i32, i32) {
    %c0_i32 = arith.constant 0 : i32
    %c0_i32_0 = arith.constant 0 : i32
    %c0_i32_1 = arith.constant 0 : i32
    return %c0_i32, %c0_i32_0 : i32, i32
  }
  func.func @transform_3(%arg0: i32) -> (i32, i32) {
    %c0_i32 = arith.constant 0 : i32
    %c0_i32_0 = arith.constant 0 : i32
    %c0_i32_1 = arith.constant 0 : i32
    return %c0_i32, %c0_i32_0 : i32, i32
  }
  func.func @transform_4(%arg0: i32) -> (i32, i32) {
    %c0_i32 = arith.constant 0 : i32
    %c0_i32_0 = arith.constant 0 : i32
    %c0_i32_1 = arith.constant 0 : i32
    return %c0_i32, %c0_i32_0 : i32, i32
  }
  func.func @transform_5(%arg0: i32) -> (i32, i32) {
    %c0_i32 = arith.constant 0 : i32
    %c0_i32_0 = arith.constant 0 : i32
    %c0_i32_1 = arith.constant 0 : i32
    return %c0_i32, %c0_i32_0 : i32, i32
  }
  func.func @transform_6(%arg0: i32) -> (i32, i32, i32) {
    %c0_i32 = arith.constant 0 : i32
    %c0_i32_0 = arith.constant 0 : i32
    %c0_i32_1 = arith.constant 0 : i32
    %c0_i32_2 = arith.constant 0 : i32
    return %c0_i32, %c0_i32_0, %c0_i32_1 : i32, i32, i32
  }
}

</mosaic_0001>

<llo_original>
// kernel: sub.0
$region0: #{sub.0}
  #allocation0 [shape = 's32[1]{0}', space=sflag, size = 0x4, scoped, tag = 'scoped memory for sub.0']
  %s0 = inlined_call_operand.vmem [shape: f32[6,12], index: 0, kind: input, shape index: {}]
  %s1 = inlined_call_operand.vmem [shape: f32[6,12], index: 1, kind: input, shape index: {}]
  %s2 = inlined_call_operand.vmem [shape: bf16[6,12], index: 2, kind: output, shape index: {}]
  %v3 = vld [vmem:[%s0] sm:$0x3f]
  %v4 = vld [vmem:[%s1] sm:$0x3f]
  %5 = xla_tuple %v3, %v4
  %6 = xla_tuple %5
  %v7 = vsub.f32 %v3, %v4
  %8 = xla_tuple %v7
  %v9 = vpack.c.bf16 0.0, %v7
  %10 = vst [vmem:[%s2] sm:$0xf] %v9

// kernel: smn_forward.1
$region0: #{smn_forward.1}
  #allocation0 [shape = 'u32[]', space=smem, size = 0x4, offset = 0x4, fixed_abs, tag = 'smem constant byte address 0x4 - core index']
  #allocation1 [shape = 'u32[144,128]{1,0:T(1,128)}', space=vmem, size = 0x12000, scoped, tag = 'internal scratch']
  %s0 = inlined_call_operand.vmem [shape: f32[6,8,128], index: 0, kind: input, shape index: {}]
  %s1 = inlined_call_operand.vmem [shape: f32[32,8], index: 1, kind: input, shape index: {}]
  %s2 = inlined_call_operand.vmem [shape: f32[128,128], index: 2, kind: input, shape index: {}]
  %s3 = inlined_call_operand.vmem [shape: f32[128,128], index: 3, kind: input, shape index: {}]
  %s4 = inlined_call_operand.vmem [shape: f32[6,128], index: 4, kind: input, shape index: {}]
  %s5 = inlined_call_operand.vmem [shape: f32[128,2], index: 5, kind: input, shape index: {}]
  %s6 = inlined_call_operand.hbm [shape: f32[2,32,128], index: 6, kind: output, shape index: {}]
  %s7 = sld [smem:[#allocation0]]
  $region34: #{smn_forward.1} parent=0
    _
  %s9 = ssub.s32 1, %s7
  %s10 = scalar_select 0, %s9, %s7
  $region1: #{smn_forward.1} parent=0
    #allocation2 [shape = 'u8[32768]{0}', space=vmem, size = 0x8000, scoped, tag = 'output window, operand 0, single buffered']
    #allocation3 [shape = 's32[1]{0}', space=sflag, size = 0x4, scoped, tag = 'scoped memory for smn_forward.1']
    %11 = vsyncpa [#allocation3], 0
    // Predicated region
    $region2: #{smn_forward.1} parent=1 // pred_check
      _
    $region3: #{smn_forward.1} parent=1 // pred_check_branch
      %13 = sbr.rel (0) target = $region5
    $region4: #{smn_forward.1} parent=1 // pred_region
      _
    $region5: #{smn_forward.1} parent=1 // pred_fallthru
      _
    // Predicated region
    $region6: #{smn_forward.1} parent=1 // pred_check
      _
    $region7: #{smn_forward.1} parent=1 // pred_check_branch
      %15 = sbr.rel (0) target = $region9
    $region8: #{smn_forward.1} parent=1 // pred_region
      _
    $region9: #{smn_forward.1} parent=1 // pred_fallthru
      _
    // Predicated region
    $region10: #{smn_forward.1} parent=1 // pred_check
      _
    $region11: #{smn_forward.1} parent=1 // pred_check_branch
      %17 = sbr.rel (0) target = $region13
    $region12: #{smn_forward.1} parent=1 // pred_region
      _
    $region13: #{smn_forward.1} parent=1 // pred_fallthru
      _
    // Predicated region
    $region14: #{smn_forward.1} parent=1 // pred_check
      _
    $region15: #{smn_forward.1} parent=1 // pred_check_branch
      %19 = sbr.rel (0) target = $region17
    $region16: #{smn_forward.1} parent=1 // pred_region
      _
    $region17: #{smn_forward.1} parent=1 // pred_fallthru
      _
    // Predicated region
    $region18: #{smn_forward.1} parent=1 // pred_check
      _
    $region19: #{smn_forward.1} parent=1 // pred_check_branch
      %21 = sbr.rel (0) target = $region21
    $region20: #{smn_forward.1} parent=1 // pred_region
      _
    $region21: #{smn_forward.1} parent=1 // pred_fallthru
      _
    // Predicated region
    $region22: #{smn_forward.1} parent=1 // pred_check
      _
    $region23: #{smn_forward.1} parent=1 // pred_check_branch
      %23 = sbr.rel (0) target = $region25
    $region24: #{smn_forward.1} parent=1 // pred_region
      _
    $region25: #{smn_forward.1} parent=1 // pred_fallthru
      _
    %v25 = vld [vmem:[%s1] sm:$0xff]
    %v26 = vld [vmem:[%s1 + $0x8] sm:$0xff]
    %v27 = vld [vmem:[%s1 + $0x10] sm:$0xff]
    %v28 = vld [vmem:[%s1 + $0x18] sm:$0xff]
    %v29 = vld [vmem:[%s2] sm:$0xff]
    %v30 = vld [vmem:[%s2 + $0x8] sm:$0xff]
    %v31 = vld [vmem:[%s2 + $0x10] sm:$0xff]
    %v32 = vld [vmem:[%s2 + $0x18] sm:$0xff]
    %v33 = vld [vmem:[%s2 + $0x20] sm:$0xff]
    %v34 = vld [vmem:[%s2 + $0x28] sm:$0xff]
    %v35 = vld [vmem:[%s2 + $0x30] sm:$0xff]
    %v36 = vld [vmem:[%s2 + $0x38] sm:$0xff]
    %v37 = vld [vmem:[%s2 + $0x40] sm:$0xff]
    %v38 = vld [vmem:[%s2 + $0x48] sm:$0xff]
    %v39 = vld [vmem:[%s2 + $0x50] sm:$0xff]
    %v40 = vld [vmem:[%s2 + $0x58] sm:$0xff]
    %v41 = vld [vmem:[%s2 + $0x60] sm:$0xff]
    %v42 = vld [vmem:[%s2 + $0x68] sm:$0xff]
    %v43 = vld [vmem:[%s2 + $0x70] sm:$0xff]
    %v44 = vld [vmem:[%s2 + $0x78] sm:$0xff]
    %v45 = vld [vmem:[%s3] sm:$0xff]
    %v46 = vld [vmem:[%s3 + $0x8] sm:$0xff]
    %v47 = vld [vmem:[%s3 + $0x10] sm:$0xff]
    %v48 = vld [vmem:[%s3 + $0x18] sm:$0xff]
    %v49 = vld [vmem:[%s3 + $0x20] sm:$0xff]
    %v50 = vld [vmem:[%s3 + $0x28] sm:$0xff]
    %v51 = vld [vmem:[%s3 + $0x30] sm:$0xff]
    %v52 = vld [vmem:[%s3 + $0x38] sm:$0xff]
    %v53 = vld [vmem:[%s3 + $0x40] sm:$0xff]
    %v54 = vld [vmem:[%s3 + $0x48] sm:$0xff]
    %v55 = vld [vmem:[%s3 + $0x50] sm:$0xff]
    %v56 = vld [vmem:[%s3 + $0x58] sm:$0xff]
    %v57 = vld [vmem:[%s3 + $0x60] sm:$0xff]
    %v58 = vld [vmem:[%s3 + $0x68] sm:$0xff]
    %v59 = vld [vmem:[%s3 + $0x70] sm:$0xff]
    %v60 = vld [vmem:[%s3 + $0x78] sm:$0xff]
    %v61 = vld [vmem:[%s4] sm:$0x3f]
    %v62 = vld [vmem:[%s5] sm:$0xff]
    %v63 = vld [vmem:[%s5 + $0x8] sm:$0xff]
    %v64 = vld [vmem:[%s5 + $0x10] sm:$0xff]
    %v65 = vld [vmem:[%s5 + $0x18] sm:$0xff]
    %v66 = vld [vmem:[%s5 + $0x20] sm:$0xff]
    %v67 = vld [vmem:[%s5 + $0x28] sm:$0xff]
    %v68 = vld [vmem:[%s5 + $0x30] sm:$0xff]
    %v69 = vld [vmem:[%s5 + $0x38] sm:$0xff]
    %v70 = vld [vmem:[%s5 + $0x40] sm:$0xff]
    %v71 = vld [vmem:[%s5 + $0x48] sm:$0xff]
    %v72 = vld [vmem:[%s5 + $0x50] sm:$0xff]
    %v73 = vld [vmem:[%s5 + $0x58] sm:$0xff]
    %v74 = vld [vmem:[%s5 + $0x60] sm:$0xff]
    %v75 = vld [vmem:[%s5 + $0x68] sm:$0xff]
    %v76 = vld [vmem:[%s5 + $0x70] sm:$0xff]
    %v77 = vld [vmem:[%s5 + $0x78] sm:$0xff]
    %v78 = vld [vmem:[%s0] sm:$0xff]
    %vm79 = vcmask 64512
    %v81 = vsel %vm79, %v25, 0
    %v84 = vsel %vm79, %v26, 0
    %v87 = vsel %vm79, %v27, 0
    %v90 = vsel %vm79, %v28, 0
    %92 = vmatprep.subr.mxu0 0.0
    %93 = vmatpush1.msra.mxu0 0.0
    %94 = vmatprep.subr.mxu0 0.0
    %95 = vmatpush1.msra.mxu0 0.0
    %96 = vmatprep.subr.mxu0 0.0
    %97 = vmatpush1.msra.mxu0 0.0
    %98 = vmatprep.subr.mxu0 0.0
    %99 = vmatpush1.msra.mxu0 0.0
    %100 = vmatprep.subr.mxu0 0.0
    %101 = vmatpush1.msra.mxu0 0.0
    %102 = vmatprep.subr.mxu0 0.0
    %103 = vmatpush1.msra.mxu0 0.0
    %104 = vmatprep.subr.mxu0 0.0
    %105 = vmatpush1.msra.mxu0 0.0
    %106 = vmatprep.subr.mxu0 0.0
    %107 = vmatpush1.msra.mxu0 0.0
    %108 = vmatprep.subr.mxu0 0.0
    %109 = vmatpush1.msra.mxu0 0.0
    %110 = vmatprep.subr.mxu0 0.0
    %111 = vmatpush1.msra.mxu0 0.0
    %112 = vmatprep.subr.mxu0 0.0
    %113 = vmatpush1.msra.mxu0 0.0
    %114 = vmatprep.subr.mxu0 0.0
    %115 = vmatpush1.msra.mxu0 0.0
    %116 = vmatprep.subr.mxu0 0.0
    %117 = vmatpush1.msra.mxu0 0.0
    %118 = vmatprep.subr.mxu0 0.0
    %119 = vmatpush1.msra.mxu0 0.0
    %120 = vmatprep.subr.mxu0 0.0
    %121 = vmatpush1.msra.mxu0 0.0
    %122 = vmatprep.subr.mxu0 0.0
    %123 = vmatpush1.msra.mxu0 %v78
    %124 = vmatprep.subr.mxu0 0.0
    %125 = vmatpush2.msra.mxu0 0.0
    %126 = vmatprep.subr.mxu0 0.0
    %127 = vmatpush2.msra.mxu0 0.0
    %128 = vmatprep.subr.mxu0 0.0
    %129 = vmatpush2.msra.mxu0 0.0
    %130 = vmatprep.subr.mxu0 0.0
    %131 = vmatpush2.msra.mxu0 0.0
    %132 = vmatprep.subr.mxu0 0.0
    %133 = vmatpush2.msra.mxu0 0.0
    %134 = vmatprep.subr.mxu0 0.0
    %135 = vmatpush2.msra.mxu0 0.0
    %136 = vmatprep.subr.mxu0 0.0
    %137 = vmatpush2.msra.mxu0 0.0
    %138 = vmatprep.subr.mxu0 0.0
    %139 = vmatpush2.msra.mxu0 0.0
    %140 = vmatprep.subr.mxu0 0.0
    %141 = vmatpush2.msra.mxu0 0.0
    %142 = vmatprep.subr.mxu0 0.0
    %143 = vmatpush2.msra.mxu0 0.0
    %144 = vmatprep.subr.mxu0 0.0
    %145 = vmatpush2.msra.mxu0 0.0
    %146 = vmatprep.subr.mxu0 0.0
    %147 = vmatpush2.msra.mxu0 0.0
    %148 = vmatprep.subr.mxu0 0.0
    %149 = vmatpush2.msra.mxu0 0.0
    %150 = vmatprep.subr.mxu0 0.0
    %151 = vmatpush2.msra.mxu0 0.0
    %152 = vmatprep.subr.mxu0 0.0
    %153 = vmatpush2.msra.mxu0 0.0
    %154 = vmatprep.subr.mxu0 0.0
    %155 = vmatpush2.msra.mxu0 0.0
    %156 = vmatprep.mubr.f32.mxu0 0.0
    %157 = vmatmul.mubr.f32.gmra.mxu0 %v81
    %v158 = vpop.f32.mrf.mxu0
    %v159 = vadd.f32 0.0, %v158
    %v160 = vpop.f32.mrf.mxu0
    %161 = vmatprep.mubr.f32.mxu0 0.0
    %162 = vmatmul.mubr.f32.gmra.mxu0 %v84
    %v163 = vpop.f32.mrf.mxu0
    %v164 = vadd.f32 0.0, %v163
    %v165 = vpop.f32.mrf.mxu0
    %166 = vmatprep.mubr.f32.mxu0 0.0
    %167 = vmatmul.mubr.f32.gmra.mxu0 %v87
    %v168 = vpop.f32.mrf.mxu0
    %v169 = vadd.f32 0.0, %v168
    %v170 = vpop.f32.mrf.mxu0
    %171 = vmatprep.mubr.f32.mxu0 0.0
    %172 = vmatmul.mubr.f32.gmra.mxu0 %v90
    %v173 = vpop.f32.mrf.mxu0
    %v174 = vadd.f32 0.0, %v173
    %v175 = vpop.f32.mrf.mxu0
    %176 = vdwg.mxu0
    %v177 = vlaneseq
    %v178 = vshrl.u32 %v177, 7
    %v179 = vsub.s32 0, %v178
    %v180 = vrot.slane %v61, %v179
    %v181 = vsub.f32 %v29, %v180
    %v182 = vsub.f32 %v30, %v180
    %v183 = vsub.f32 %v31, %v180
    %v184 = vsub.f32 %v32, %v180
    %v185 = vsub.f32 %v33, %v180
    %v186 = vsub.f32 %v34, %v180
    %v187 = vsub.f32 %v35, %v180
    %v188 = vsub.f32 %v36, %v180
    %v189 = vsub.f32 %v37, %v180
    %v190 = vsub.f32 %v38, %v180
    %v191 = vsub.f32 %v39, %v180
    %v192 = vsub.f32 %v40, %v180
    %v193 = vsub.f32 %v41, %v180
    %v194 = vsub.f32 %v42, %v180
    %v195 = vsub.f32 %v43, %v180
    %v196 = vsub.f32 %v44, %v180
    %197 = vmax.xlane.f32.xlu0 %v181
    %v198 = vpop.xlane.xlu0 %197
    %199 = vmax.xlane.f32.xlu0 %v182
    %v200 = vpop.xlane.xlu0 %199
    %201 = vmax.xlane.f32.xlu0 %v183
    %v202 = vpop.xlane.xlu0 %201
    %203 = vmax.xlane.f32.xlu0 %v184
    %v204 = vpop.xlane.xlu0 %203
    %205 = vmax.xlane.f32.xlu0 %v185
    %v206 = vpop.xlane.xlu0 %205
    %207 = vmax.xlane.f32.xlu0 %v186
    %v208 = vpop.xlane.xlu0 %207
    %209 = vmax.xlane.f32.xlu0 %v187
    %v210 = vpop.xlane.xlu0 %209
    %211 = vmax.xlane.f32.xlu0 %v188
    %v212 = vpop.xlane.xlu0 %211
    %213 = vmax.xlane.f32.xlu0 %v189
    %v214 = vpop.xlane.xlu0 %213
    %215 = vmax.xlane.f32.xlu0 %v190
    %v216 = vpop.xlane.xlu0 %215
    %217 = vmax.xlane.f32.xlu0 %v191
    %v218 = vpop.xlane.xlu0 %217
    %219 = vmax.xlane.f32.xlu0 %v192
    %v220 = vpop.xlane.xlu0 %219
    %221 = vmax.xlane.f32.xlu0 %v193
    %v222 = vpop.xlane.xlu0 %221
    %223 = vmax.xlane.f32.xlu0 %v194
    %v224 = vpop.xlane.xlu0 %223
    %225 = vmax.xlane.f32.xlu0 %v195
    %v226 = vpop.xlane.xlu0 %225
    %227 = vmax.xlane.f32.xlu0 %v196
    %v228 = vpop.xlane.xlu0 %227
    %v229 = vsub.f32 %v181, %v198
    %v230 = vsub.f32 %v182, %v200
    %v231 = vsub.f32 %v183, %v202
    %v232 = vsub.f32 %v184, %v204
    %v233 = vsub.f32 %v185, %v206
    %v234 = vsub.f32 %v186, %v208
    %v235 = vsub.f32 %v187, %v210
    %v236 = vsub.f32 %v188, %v212
    %v237 = vsub.f32 %v189, %v214
    %v238 = vsub.f32 %v190, %v216
    %v239 = vsub.f32 %v191, %v218
    %v240 = vsub.f32 %v192, %v220
    %v241 = vsub.f32 %v193, %v222
    %v242 = vsub.f32 %v194, %v224
    %v243 = vsub.f32 %v195, %v226
    %v244 = vsub.f32 %v196, %v228
    %v245 = vmul.f32 %v229, 1.442695
    %v246 = vpow.pop %v245
    %v247 = vmul.f32 %v230, 1.442695
    %v248 = vpow.pop %v247
    %v249 = vmul.f32 %v231, 1.442695
    %v250 = vpow.pop %v249
    %v251 = vmul.f32 %v232, 1.442695
    %v252 = vpow.pop %v251
    %v253 = vmul.f32 %v233, 1.442695
    %v254 = vpow.pop %v253
    %v255 = vmul.f32 %v234, 1.442695
    %v256 = vpow.pop %v255
    %v257 = vmul.f32 %v235, 1.442695
    %v258 = vpow.pop %v257
    %v259 = vmul.f32 %v236, 1.442695
    %v260 = vpow.pop %v259
    %v261 = vmul.f32 %v237, 1.442695
    %v262 = vpow.pop %v261
    %v263 = vmul.f32 %v238, 1.442695
    %v264 = vpow.pop %v263
    %v265 = vmul.f32 %v239, 1.442695
    %v266 = vpow.pop %v265
    %v267 = vmul.f32 %v240, 1.442695
    %v268 = vpow.pop %v267
    %v269 = vmul.f32 %v241, 1.442695
    %v270 = vpow.pop %v269
    %v271 = vmul.f32 %v242, 1.442695
    %v272 = vpow.pop %v271
    %v273 = vmul.f32 %v243, 1.442695
    %v274 = vpow.pop %v273
    %v275 = vmul.f32 %v244, 1.442695
    %v276 = vpow.pop %v275
    %277 = vadd.xlane.f32.xlu0 %v246
    %v278 = vpop.xlane.xlu0 %277
    %279 = vadd.xlane.f32.xlu0 %v248
    %v280 = vpop.xlane.xlu0 %279
    %281 = vadd.xlane.f32.xlu0 %v250
    %v282 = vpop.xlane.xlu0 %281
    %283 = vadd.xlane.f32.xlu0 %v252
    %v284 = vpop.xlane.xlu0 %283
    %285 = vadd.xlane.f32.xlu0 %v254
    %v286 = vpop.xlane.xlu0 %285
    %287 = vadd.xlane.f32.xlu0 %v256
    %v288 = vpop.xlane.xlu0 %287
    %289 = vadd.xlane.f32.xlu0 %v258
    %v290 = vpop.xlane.xlu0 %289
    %291 = vadd.xlane.f32.xlu0 %v260
    %v292 = vpop.xlane.xlu0 %291
    %293 = vadd.xlane.f32.xlu0 %v262
    %v294 = vpop.xlane.xlu0 %293
    %295 = vadd.xlane.f32.xlu0 %v264
    %v296 = vpop.xlane.xlu0 %295
    %297 = vadd.xlane.f32.xlu0 %v266
    %v298 = vpop.xlane.xlu0 %297
    %299 = vadd.xlane.f32.xlu0 %v268
    %v300 = vpop.xlane.xlu0 %299
    %301 = vadd.xlane.f32.xlu0 %v270
    %v302 = vpop.xlane.xlu0 %301
    %303 = vadd.xlane.f32.xlu0 %v272
    %v304 = vpop.xlane.xlu0 %303
    %305 = vadd.xlane.f32.xlu0 %v274
    %v306 = vpop.xlane.xlu0 %305
    %307 = vadd.xlane.f32.xlu0 %v276
    %v308 = vpop.xlane.xlu0 %307
    %v309 = vrcp.pop %v278
    %v310 = vrcp.pop %v280
    %v311 = vrcp.pop %v282
    %v312 = vrcp.pop %v284
    %v313 = vrcp.pop %v286
    %v314 = vrcp.pop %v288
    %v315 = vrcp.pop %v290
    %v316 = vrcp.pop %v292
    %v317 = vrcp.pop %v294
    %v318 = vrcp.pop %v296
    %v319 = vrcp.pop %v298
    %v320 = vrcp.pop %v300
    %v321 = vrcp.pop %v302
    %v322 = vrcp.pop %v304
    %v323 = vrcp.pop %v306
    %v324 = vrcp.pop %v308
    %v325 = vmul.f32 %v246, %v309
    %v326 = vmul.f32 %v248, %v310
    %v327 = vmul.f32 %v250, %v311
    %v328 = vmul.f32 %v252, %v312
    %v329 = vmul.f32 %v254, %v313
    %v330 = vmul.f32 %v256, %v314
    %v331 = vmul.f32 %v258, %v315
    %v332 = vmul.f32 %v260, %v316
    %v333 = vmul.f32 %v262, %v317
    %v334 = vmul.f32 %v264, %v318
    %v335 = vmul.f32 %v266, %v319
    %v336 = vmul.f32 %v268, %v320
    %v337 = vmul.f32 %v270, %v321
    %v338 = vmul.f32 %v272, %v322
    %v339 = vmul.f32 %v274, %v323
    %v340 = vmul.f32 %v276, %v324
    %v341 = vpack.c.bf16 %v164, %v159
    %v342 = vpack.c.bf16 %v174, %v169
    %v343 = vpack.c.bf16 %v326, %v325
    %v344 = vpack.c.bf16 %v328, %v327
    %v345 = vpack.c.bf16 %v330, %v329
    %v346 = vpack.c.bf16 %v332, %v331
    %v347 = vpack.c.bf16 %v334, %v333
    %v348 = vpack.c.bf16 %v336, %v335
    %v349 = vpack.c.bf16 %v338, %v337
    %v350 = vpack.c.bf16 %v340, %v339
    %s351 = scalar_lea.vmem %s0, 8
    %v352 = vld [vmem:[%s351] sm:$0xff]
    %353 = vmatprep.subr.mxu0 0.0
    %354 = vmatpush1.msra.mxu0 0.0
    %355 = vmatprep.subr.mxu0 0.0
    %356 = vmatpush1.msra.mxu0 0.0
    %357 = vmatprep.subr.mxu0 0.0
    %358 = vmatpush1.msra.mxu0 0.0
    %359 = vmatprep.subr.mxu0 0.0
    %360 = vmatpush1.msra.mxu0 0.0
    %361 = vmatprep.subr.mxu0 0.0
    %362 = vmatpush1.msra.mxu0 0.0
    %363 = vmatprep.subr.mxu0 0.0
    %364 = vmatpush1.msra.mxu0 0.0
    %365 = vmatprep.subr.mxu0 0.0
    %366 = vmatpush1.msra.mxu0 0.0
    %367 = vmatprep.subr.mxu0 0.0
    %368 = vmatpush1.msra.mxu0 0.0
    %369 = vmatprep.subr.mxu0 0.0
    %370 = vmatpush1.msra.mxu0 0.0
    %371 = vmatprep.subr.mxu0 0.0
    %372 = vmatpush1.msra.mxu0 0.0
    %373 = vmatprep.subr.mxu0 0.0
    %374 = vmatpush1.msra.mxu0 0.0
    %375 = vmatprep.subr.mxu0 0.0
    %376 = vmatpush1.msra.mxu0 0.0
    %377 = vmatprep.subr.mxu0 0.0
    %378 = vmatpush1.msra.mxu0 0.0
    %379 = vmatprep.subr.mxu0 0.0
    %380 = vmatpush1.msra.mxu0 0.0
    %381 = vmatprep.subr.mxu0 0.0
    %382 = vmatpush1.msra.mxu0 0.0
    %383 = vmatprep.subr.mxu0 0.0
    %384 = vmatpush1.msra.mxu0 %v352
    %385 = vmatprep.subr.mxu0 0.0
    %386 = vmatpush2.msra.mxu0 0.0
    %387 = vmatprep.subr.mxu0 0.0
    %388 = vmatpush2.msra.mxu0 0.0
    %389 = vmatprep.subr.mxu0 0.0
    %390 = vmatpush2.msra.mxu0 0.0
    %391 = vmatprep.subr.mxu0 0.0
    %392 = vmatpush2.msra.mxu0 0.0
    %393 = vmatprep.subr.mxu0 0.0
    %394 = vmatpush2.msra.mxu0 0.0
    %395 = vmatprep.subr.mxu0 0.0
    %396 = vmatpush2.msra.mxu0 0.0
    %397 = vmatprep.subr.mxu0 0.0
    %398 = vmatpush2.msra.mxu0 0.0
    %399 = vmatprep.subr.mxu0 0.0
    %400 = vmatpush2.msra.mxu0 0.0
    %401 = vmatprep.subr.mxu0 0.0
    %402 = vmatpush2.msra.mxu0 0.0
    %403 = vmatprep.subr.mxu0 0.0
    %404 = vmatpush2.msra.mxu0 0.0
    %405 = vmatprep.subr.mxu0 0.0
    %406 = vmatpush2.msra.mxu0 0.0
    %407 = vmatprep.subr.mxu0 0.0
    %408 = vmatpush2.msra.mxu0 0.0
    %409 = vmatprep.subr.mxu0 0.0
    %410 = vmatpush2.msra.mxu0 0.0
    %411 = vmatprep.subr.mxu0 0.0
    %412 = vmatpush2.msra.mxu0 0.0
    %413 = vmatprep.subr.mxu0 0.0
    %414 = vmatpush2.msra.mxu0 0.0
    %415 = vmatprep.subr.mxu0 0.0
    %416 = vmatpush2.msra.mxu0 0.0
    %417 = vmatprep.mubr.f32.mxu0 0.0
    %418 = vmatmul.mubr.f32.gmra.mxu0 %v81
    %v419 = vpop.f32.mrf.mxu0
    %v420 = vadd.f32 0.0, %v419
    %v421 = vpop.f32.mrf.mxu0
    %422 = vmatprep.mubr.f32.mxu0 0.0
    %423 = vmatmul.mubr.f32.gmra.mxu0 %v84
    %v424 = vpop.f32.mrf.mxu0
    %v425 = vadd.f32 0.0, %v424
    %v426 = vpop.f32.mrf.mxu0
    %427 = vmatprep.mubr.f32.mxu0 0.0
    %428 = vmatmul.mubr.f32.gmra.mxu0 %v87
    %v429 = vpop.f32.mrf.mxu0
    %v430 = vadd.f32 0.0, %v429
    %v431 = vpop.f32.mrf.mxu0
    %432 = vmatprep.mubr.f32.mxu0 0.0
    %433 = vmatmul.mubr.f32.gmra.mxu0 %v90
    %v434 = vpop.f32.mrf.mxu0
    %v435 = vadd.f32 0.0, %v434
    %v436 = vpop.f32.mrf.mxu0
    %437 = vdwg.mxu0
    %v438 = vlaneseq
    %v439 = vshrl.u32 %v438, 7
    %v440 = vsub.s32 1, %v439
    %v441 = vrot.slane %v61, %v440
    %v442 = vsub.f32 %v29, %v441
    %v443 = vsub.f32 %v30, %v441
    %v444 = vsub.f32 %v31, %v441
    %v445 = vsub.f32 %v32, %v441
    %v446 = vsub.f32 %v33, %v441
    %v447 = vsub.f32 %v34, %v441
    %v448 = vsub.f32 %v35, %v441
    %v449 = vsub.f32 %v36, %v441
    %v450 = vsub.f32 %v37, %v441
    %v451 = vsub.f32 %v38, %v441
    %v452 = vsub.f32 %v39, %v441
    %v453 = vsub.f32 %v40, %v441
    %v454 = vsub.f32 %v41, %v441
    %v455 = vsub.f32 %v42, %v441
    %v456 = vsub.f32 %v43, %v441
    %v457 = vsub.f32 %v44, %v441
    %458 = vmax.xlane.f32.xlu0 %v442
    %v459 = vpop.xlane.xlu0 %458
    %460 = vmax.xlane.f32.xlu0 %v443
    %v461 = vpop.xlane.xlu0 %460
    %462 = vmax.xlane.f32.xlu0 %v444
    %v463 = vpop.xlane.xlu0 %462
    %464 = vmax.xlane.f32.xlu0 %v445
    %v465 = vpop.xlane.xlu0 %464
    %466 = vmax.xlane.f32.xlu0 %v446
    %v467 = vpop.xlane.xlu0 %466
    %468 = vmax.xlane.f32.xlu0 %v447
    %v469 = vpop.xlane.xlu0 %468
    %470 = vmax.xlane.f32.xlu0 %v448
    %v471 = vpop.xlane.xlu0 %470
    %472 = vmax.xlane.f32.xlu0 %v449
    %v473 = vpop.xlane.xlu0 %472
    %474 = vmax.xlane.f32.xlu0 %v450
    %v475 = vpop.xlane.xlu0 %474
    %476 = vmax.xlane.f32.xlu0 %v451
    %v477 = vpop.xlane.xlu0 %476
    %478 = vmax.xlane.f32.xlu0 %v452
    %v479 = vpop.xlane.xlu0 %478
    %480 = vmax.xlane.f32.xlu0 %v453
    %v481 = vpop.xlane.xlu0 %480
    %482 = vmax.xlane.f32.xlu0 %v454
    %v483 = vpop.xlane.xlu0 %482
    %484 = vmax.xlane.f32.xlu0 %v455
    %v485 = vpop.xlane.xlu0 %484
    %486 = vmax.xlane.f32.xlu0 %v456
    %v487 = vpop.xlane.xlu0 %486
    %488 = vmax.xlane.f32.xlu0 %v457
    %v489 = vpop.xlane.xlu0 %488
    %v490 = vsub.f32 %v442, %v459
    %v491 = vsub.f32 %v443, %v461
    %v492 = vsub.f32 %v444, %v463
    %v493 = vsub.f32 %v445, %v465
    %v494 = vsub.f32 %v446, %v467
    %v495 = vsub.f32 %v447, %v469
    %v496 = vsub.f32 %v448, %v471
    %v497 = vsub.f32 %v449, %v473
    %v498 = vsub.f32 %v450, %v475
    %v499 = vsub.f32 %v451, %v477
    %v500 = vsub.f32 %v452, %v479
    %v501 = vsub.f32 %v453, %v481
    %v502 = vsub.f32 %v454, %v483
    %v503 = vsub.f32 %v455, %v485
    %v504 = vsub.f32 %v456, %v487
    %v505 = vsub.f32 %v457, %v489
    %v506 = vmul.f32 %v490, 1.442695
    %v507 = vpow.pop %v506
    %v508 = vmul.f32 %v491, 1.442695
    %v509 = vpow.pop %v508
    %v510 = vmul.f32 %v492, 1.442695
    %v511 = vpow.pop %v510
    %v512 = vmul.f32 %v493, 1.442695
    %v513 = vpow.pop %v512
    %v514 = vmul.f32 %v494, 1.442695
    %v515 = vpow.pop %v514
    %v516 = vmul.f32 %v495, 1.442695
    %v517 = vpow.pop %v516
    %v518 = vmul.f32 %v496, 1.442695
    %v519 = vpow.pop %v518
    %v520 = vmul.f32 %v497, 1.442695
    %v521 = vpow.pop %v520
    %v522 = vmul.f32 %v498, 1.442695
    %v523 = vpow.pop %v522
    %v524 = vmul.f32 %v499, 1.442695
    %v525 = vpow.pop %v524
    %v526 = vmul.f32 %v500, 1.442695
    %v527 = vpow.pop %v526
    %v528 = vmul.f32 %v501, 1.442695
    %v529 = vpow.pop %v528
    %v530 = vmul.f32 %v502, 1.442695
    %v531 = vpow.pop %v530
    %v532 = vmul.f32 %v503, 1.442695
    %v533 = vpow.pop %v532
    %v534 = vmul.f32 %v504, 1.442695
    %v535 = vpow.pop %v534
    %v536 = vmul.f32 %v505, 1.442695
    %v537 = vpow.pop %v536
    %538 = vadd.xlane.f32.xlu0 %v507
    %v539 = vpop.xlane.xlu0 %538
    %540 = vadd.xlane.f32.xlu0 %v509
    %v541 = vpop.xlane.xlu0 %540
    %542 = vadd.xlane.f32.xlu0 %v511
    %v543 = vpop.xlane.xlu0 %542
    %544 = vadd.xlane.f32.xlu0 %v513
    %v545 = vpop.xlane.xlu0 %544
    %546 = vadd.xlane.f32.xlu0 %v515
    %v547 = vpop.xlane.xlu0 %546
    %548 = vadd.xlane.f32.xlu0 %v517
    %v549 = vpop.xlane.xlu0 %548
    %550 = vadd.xlane.f32.xlu0 %v519
    %v551 = vpop.xlane.xlu0 %550
    %552 = vadd.xlane.f32.xlu0 %v521
    %v553 = vpop.xlane.xlu0 %552
    %554 = vadd.xlane.f32.xlu0 %v523
    %v555 = vpop.xlane.xlu0 %554
    %556 = vadd.xlane.f32.xlu0 %v525
    %v557 = vpop.xlane.xlu0 %556
    %558 = vadd.xlane.f32.xlu0 %v527
    %v559 = vpop.xlane.xlu0 %558
    %560 = vadd.xlane.f32.xlu0 %v529
    %v561 = vpop.xlane.xlu0 %560
    %562 = vadd.xlane.f32.xlu0 %v531
    %v563 = vpop.xlane.xlu0 %562
    %564 = vadd.xlane.f32.xlu0 %v533
    %v565 = vpop.xlane.xlu0 %564
    %566 = vadd.xlane.f32.xlu0 %v535
    %v567 = vpop.xlane.xlu0 %566
    %568 = vadd.xlane.f32.xlu0 %v537
    %v569 = vpop.xlane.xlu0 %568
    %v570 = vrcp.pop %v539
    %v571 = vrcp.pop %v541
    %v572 = vrcp.pop %v543
    %v573 = vrcp.pop %v545
    %v574 = vrcp.pop %v547
    %v575 = vrcp.pop %v549
    %v576 = vrcp.pop %v551
    %v577 = vrcp.pop %v553
    %v578 = vrcp.pop %v555
    %v579 = vrcp.pop %v557
    %v580 = vrcp.pop %v559
    %v581 = vrcp.pop %v561
    %v582 = vrcp.pop %v563
    %v583 = vrcp.pop %v565
    %v584 = vrcp.pop %v567
    %v585 = vrcp.pop %v569
    %v586 = vmul.f32 %v507, %v570
    %v587 = vmul.f32 %v509, %v571
    %v588 = vmul.f32 %v511, %v572
    %v589 = vmul.f32 %v513, %v573
    %v590 = vmul.f32 %v515, %v574
    %v591 = vmul.f32 %v517, %v575
    %v592 = vmul.f32 %v519, %v576
    %v593 = vmul.f32 %v521, %v577
    %v594 = vmul.f32 %v523, %v578
    %v595 = vmul.f32 %v525, %v579
    %v596 = vmul.f32 %v527, %v580
    %v597 = vmul.f32 %v529, %v581
    %v598 = vmul.f32 %v531, %v582
    %v599 = vmul.f32 %v533, %v583
    %v600 = vmul.f32 %v535, %v584
    %v601 = vmul.f32 %v537, %v585
    %v602 = vpack.c.bf16 %v425, %v420
    %v603 = vpack.c.bf16 %v435, %v430
    %v604 = vpack.c.bf16 %v587, %v586
    %v605 = vpack.c.bf16 %v589, %v588
    %v606 = vpack.c.bf16 %v591, %v590
    %v607 = vpack.c.bf16 %v593, %v592
    %v608 = vpack.c.bf16 %v595, %v594
    %v609 = vpack.c.bf16 %v597, %v596
    %v610 = vpack.c.bf16 %v599, %v598
    %v611 = vpack.c.bf16 %v601, %v600
    %612 = vmatprep.subr.bf16.mxu0 0
    %613 = vmatpush1.bf16.msra.mxu0 %v611
    %614 = vmatprep.subr.bf16.mxu0 0
    %615 = vmatpush1.bf16.msra.mxu0 %v610
    %616 = vmatprep.subr.bf16.mxu0 0
    %617 = vmatpush1.bf16.msra.mxu0 %v609
    %618 = vmatprep.subr.bf16.mxu0 0
    %619 = vmatpush1.bf16.msra.mxu0 %v608
    %620 = vmatprep.subr.bf16.mxu0 0
    %621 = vmatpush1.bf16.msra.mxu0 %v607
    %622 = vmatprep.subr.bf16.mxu0 0
    %623 = vmatpush1.bf16.msra.mxu0 %v606
    %624 = vmatprep.subr.bf16.mxu0 0
    %625 = vmatpush1.bf16.msra.mxu0 %v605
    %626 = vmatprep.subr.bf16.mxu0 0
    %627 = vmatpush1.bf16.msra.mxu0 %v604
    %628 = vmatprep.subr.bf16.mxu0 0
    %629 = vmatpush2.bf16.msra.mxu0 0
    %630 = vmatprep.subr.bf16.mxu0 0
    %631 = vmatpush2.bf16.msra.mxu0 0
    %632 = vmatprep.subr.bf16.mxu0 0
    %633 = vmatpush2.bf16.msra.mxu0 0
    %634 = vmatprep.subr.bf16.mxu0 0
    %635 = vmatpush2.bf16.msra.mxu0 0
    %636 = vmatprep.subr.bf16.mxu0 0
    %637 = vmatpush2.bf16.msra.mxu0 0
    %638 = vmatprep.subr.bf16.mxu0 0
    %639 = vmatpush2.bf16.msra.mxu0 0
    %640 = vmatprep.subr.bf16.mxu0 0
    %641 = vmatpush2.bf16.msra.mxu0 0
    %642 = vmatprep.subr.bf16.mxu0 0
    %643 = vmatpush2.bf16.msra.mxu0 0
    %644 = vmatprep.mubr.bf16.mxu0 0
    %645 = vmatmul.mubr.bf16.gmra.mxu0 %v602
    %v646 = vpop.f32.mrf.mxu0
    %v647 = vadd.f32 0.0, %v646
    %v648 = vpop.f32.mrf.mxu0
    %v649 = vpop.f32.mrf.mxu0
    %v650 = vadd.f32 0.0, %v649
    %v651 = vpop.f32.mrf.mxu0
    %652 = vmatprep.mubr.bf16.mxu0 0
    %653 = vmatmul.mubr.bf16.gmra.mxu0 %v603
    %v654 = vpop.f32.mrf.mxu0
    %v655 = vadd.f32 0.0, %v654
    %v656 = vpop.f32.mrf.mxu0
    %v657 = vpop.f32.mrf.mxu0
    %v658 = vadd.f32 0.0, %v657
    %v659 = vpop.f32.mrf.mxu0
    %660 = vdwg.mxu0
    %661 = vmatprep.subr.bf16.mxu0 0
    %662 = vmatpush1.bf16.msra.mxu0 %v350
    %663 = vmatprep.subr.bf16.mxu0 0
    %664 = vmatpush1.bf16.msra.mxu0 %v349
    %665 = vmatprep.subr.bf16.mxu0 0
    %666 = vmatpush1.bf16.msra.mxu0 %v348
    %667 = vmatprep.subr.bf16.mxu0 0
    %668 = vmatpush1.bf16.msra.mxu0 %v347
    %669 = vmatprep.subr.bf16.mxu0 0
    %670 = vmatpush1.bf16.msra.mxu0 %v346
    %671 = vmatprep.subr.bf16.mxu0 0
    %672 = vmatpush1.bf16.msra.mxu0 %v345
    %673 = vmatprep.subr.bf16.mxu0 0
    %674 = vmatpush1.bf16.msra.mxu0 %v344
    %675 = vmatprep.subr.bf16.mxu0 0
    %676 = vmatpush1.bf16.msra.mxu0 %v343
    %677 = vmatprep.subr.bf16.mxu0 0
    %678 = vmatpush2.bf16.msra.mxu0 0
    %679 = vmatprep.subr.bf16.mxu0 0
    %680 = vmatpush2.bf16.msra.mxu0 0
    %681 = vmatprep.subr.bf16.mxu0 0
    %682 = vmatpush2.bf16.msra.mxu0 0
    %683 = vmatprep.subr.bf16.mxu0 0
    %684 = vmatpush2.bf16.msra.mxu0 0
    %685 = vmatprep.subr.bf16.mxu0 0
    %686 = vmatpush2.bf16.msra.mxu0 0
    %687 = vmatprep.subr.bf16.mxu0 0
    %688 = vmatpush2.bf16.msra.mxu0 0
    %689 = vmatprep.subr.bf16.mxu0 0
    %690 = vmatpush2.bf16.msra.mxu0 0
    %691 = vmatprep.subr.bf16.mxu0 0
    %692 = vmatpush2.bf16.msra.mxu0 0
    %693 = vmatprep.mubr.bf16.mxu0 0
    %694 = vmatmul.mubr.bf16.gmra.mxu0 %v341
    %v695 = vpop.f32.mrf.mxu0
    %v696 = vadd.f32 %v647, %v695
    %v697 = vpop.f32.mrf.mxu0
    %v698 = vpop.f32.mrf.mxu0
    %v699 = vadd.f32 %v650, %v698
    %v700 = vpop.f32.mrf.mxu0
    %701 = vmatprep.mubr.bf16.mxu0 0
    %702 = vmatmul.mubr.bf16.gmra.mxu0 %v342
    %v703 = vpop.f32.mrf.mxu0
    %v704 = vadd.f32 %v655, %v703
    %v705 = vpop.f32.mrf.mxu0
    %v706 = vpop.f32.mrf.mxu0
    %v707 = vadd.f32 %v658, %v706
    %v708 = vpop.f32.mrf.mxu0
    %709 = vdwg.mxu0
    %s710 = scalar_lea.vmem %s0, 16
    %v711 = vld [vmem:[%s710] sm:$0xff]
    %712 = vmatprep.subr.mxu0 0.0
    %713 = vmatpush1.msra.mxu0 0.0
    %714 = vmatprep.subr.mxu0 0.0
    %715 = vmatpush1.msra.mxu0 0.0
    %716 = vmatprep.subr.mxu0 0.0
    %717 = vmatpush1.msra.mxu0 0.0
    %718 = vmatprep.subr.mxu0 0.0
    %719 = vmatpush1.msra.mxu0 0.0
    %720 = vmatprep.subr.mxu0 0.0
    %721 = vmatpush1.msra.mxu0 0.0
    %722 = vmatprep.subr.mxu0 0.0
    %723 = vmatpush1.msra.mxu0 0.0
    %724 = vmatprep.subr.mxu0 0.0
    %725 = vmatpush1.msra.mxu0 0.0
    %726 = vmatprep.subr.mxu0 0.0
    %727 = vmatpush1.msra.mxu0 0.0
    %728 = vmatprep.subr.mxu0 0.0
    %729 = vmatpush1.msra.mxu0 0.0
    %730 = vmatprep.subr.mxu0 0.0
    %731 = vmatpush1.msra.mxu0 0.0
    %732 = vmatprep.subr.mxu0 0.0
    %733 = vmatpush1.msra.mxu0 0.0
    %734 = vmatprep.subr.mxu0 0.0
    %735 = vmatpush1.msra.mxu0 0.0
    %736 = vmatprep.subr.mxu0 0.0
    %737 = vmatpush1.msra.mxu0 0.0
    %738 = vmatprep.subr.mxu0 0.0
    %739 = vmatpush1.msra.mxu0 0.0
    %740 = vmatprep.subr.mxu0 0.0
    %741 = vmatpush1.msra.mxu0 0.0
    %742 = vmatprep.subr.mxu0 0.0
    %743 = vmatpush1.msra.mxu0 %v711
    %744 = vmatprep.subr.mxu0 0.0
    %745 = vmatpush2.msra.mxu0 0.0
    %746 = vmatprep.subr.mxu0 0.0
    %747 = vmatpush2.msra.mxu0 0.0
    %748 = vmatprep.subr.mxu0 0.0
    %749 = vmatpush2.msra.mxu0 0.0
    %750 = vmatprep.subr.mxu0 0.0
    %751 = vmatpush2.msra.mxu0 0.0
    %752 = vmatprep.subr.mxu0 0.0
    %753 = vmatpush2.msra.mxu0 0.0
    %754 = vmatprep.subr.mxu0 0.0
    %755 = vmatpush2.msra.mxu0 0.0
    %756 = vmatprep.subr.mxu0 0.0
    %757 = vmatpush2.msra.mxu0 0.0
    %758 = vmatprep.subr.mxu0 0.0
    %759 = vmatpush2.msra.mxu0 0.0
    %760 = vmatprep.subr.mxu0 0.0
    %761 = vmatpush2.msra.mxu0 0.0
    %762 = vmatprep.subr.mxu0 0.0
    %763 = vmatpush2.msra.mxu0 0.0
    %764 = vmatprep.subr.mxu0 0.0
    %765 = vmatpush2.msra.mxu0 0.0
    %766 = vmatprep.subr.mxu0 0.0
    %767 = vmatpush2.msra.mxu0 0.0
    %768 = vmatprep.subr.mxu0 0.0
    %769 = vmatpush2.msra.mxu0 0.0
    %770 = vmatprep.subr.mxu0 0.0
    %771 = vmatpush2.msra.mxu0 0.0
    %772 = vmatprep.subr.mxu0 0.0
    %773 = vmatpush2.msra.mxu0 0.0
    %774 = vmatprep.subr.mxu0 0.0
    %775 = vmatpush2.msra.mxu0 0.0
    %776 = vmatprep.mubr.f32.mxu0 0.0
    %777 = vmatmul.mubr.f32.gmra.mxu0 %v81
    %v778 = vpop.f32.mrf.mxu0
    %v779 = vadd.f32 0.0, %v778
    %v780 = vpop.f32.mrf.mxu0
    %781 = vmatprep.mubr.f32.mxu0 0.0
    %782 = vmatmul.mubr.f32.gmra.mxu0 %v84
    %v783 = vpop.f32.mrf.mxu0
    %v784 = vadd.f32 0.0, %v783
    %v785 = vpop.f32.mrf.mxu0
    %786 = vmatprep.mubr.f32.mxu0 0.0
    %787 = vmatmul.mubr.f32.gmra.mxu0 %v87
    %v788 = vpop.f32.mrf.mxu0
    %v789 = vadd.f32 0.0, %v788
    %v790 = vpop.f32.mrf.mxu0
    %791 = vmatprep.mubr.f32.mxu0 0.0
    %792 = vmatmul.mubr.f32.gmra.mxu0 %v90
    %v793 = vpop.f32.mrf.mxu0
    %v794 = vadd.f32 0.0, %v793
    %v795 = vpop.f32.mrf.mxu0
    %796 = vdwg.mxu0
    %v797 = vlaneseq
    %v798 = vshrl.u32 %v797, 7
    %v799 = vsub.s32 2, %v798
    %v800 = vrot.slane %v61, %v799
    %v801 = vsub.f32 %v29, %v800
    %v802 = vsub.f32 %v30, %v800
    %v803 = vsub.f32 %v31, %v800
    %v804 = vsub.f32 %v32, %v800
    %v805 = vsub.f32 %v33, %v800
    %v806 = vsub.f32 %v34, %v800
    %v807 = vsub.f32 %v35, %v800
    %v808 = vsub.f32 %v36, %v800
    %v809 = vsub.f32 %v37, %v800
    %v810 = vsub.f32 %v38, %v800
    %v811 = vsub.f32 %v39, %v800
    %v812 = vsub.f32 %v40, %v800
    %v813 = vsub.f32 %v41, %v800
    %v814 = vsub.f32 %v42, %v800
    %v815 = vsub.f32 %v43, %v800
    %v816 = vsub.f32 %v44, %v800
    %817 = vmax.xlane.f32.xlu0 %v801
    %v818 = vpop.xlane.xlu0 %817
    %819 = vmax.xlane.f32.xlu0 %v802
    %v820 = vpop.xlane.xlu0 %819
    %821 = vmax.xlane.f32.xlu0 %v803
    %v822 = vpop.xlane.xlu0 %821
    %823 = vmax.xlane.f32.xlu0 %v804
    %v824 = vpop.xlane.xlu0 %823
    %825 = vmax.xlane.f32.xlu0 %v805
    %v826 = vpop.xlane.xlu0 %825
    %827 = vmax.xlane.f32.xlu0 %v806
    %v828 = vpop.xlane.xlu0 %827
    %829 = vmax.xlane.f32.xlu0 %v807
    %v830 = vpop.xlane.xlu0 %829
    %831 = vmax.xlane.f32.xlu0 %v808
    %v832 = vpop.xlane.xlu0 %831
    %833 = vmax.xlane.f32.xlu0 %v809
    %v834 = vpop.xlane.xlu0 %833
    %835 = vmax.xlane.f32.xlu0 %v810
    %v836 = vpop.xlane.xlu0 %835
    %837 = vmax.xlane.f32.xlu0 %v811
    %v838 = vpop.xlane.xlu0 %837
    %839 = vmax.xlane.f32.xlu0 %v812
    %v840 = vpop.xlane.xlu0 %839
    %841 = vmax.xlane.f32.xlu0 %v813
    %v842 = vpop.xlane.xlu0 %841
    %843 = vmax.xlane.f32.xlu0 %v814
    %v844 = vpop.xlane.xlu0 %843
    %845 = vmax.xlane.f32.xlu0 %v815
    %v846 = vpop.xlane.xlu0 %845
    %847 = vmax.xlane.f32.xlu0 %v816
    %v848 = vpop.xlane.xlu0 %847
    %v849 = vsub.f32 %v801, %v818
    %v850 = vsub.f32 %v802, %v820
    %v851 = vsub.f32 %v803, %v822
    %v852 = vsub.f32 %v804, %v824
    %v853 = vsub.f32 %v805, %v826
    %v854 = vsub.f32 %v806, %v828
    %v855 = vsub.f32 %v807, %v830
    %v856 = vsub.f32 %v808, %v832
    %v857 = vsub.f32 %v809, %v834
    %v858 = vsub.f32 %v810, %v836
    %v859 = vsub.f32 %v811, %v838
    %v860 = vsub.f32 %v812, %v840
    %v861 = vsub.f32 %v813, %v842
    %v862 = vsub.f32 %v814, %v844
    %v863 = vsub.f32 %v815, %v846
    %v864 = vsub.f32 %v816, %v848
    %v865 = vmul.f32 %v849, 1.442695
    %v866 = vpow.pop %v865
    %v867 = vmul.f32 %v850, 1.442695
    %v868 = vpow.pop %v867
    %v869 = vmul.f32 %v851, 1.442695
    %v870 = vpow.pop %v869
    %v871 = vmul.f32 %v852, 1.442695
    %v872 = vpow.pop %v871
    %v873 = vmul.f32 %v853, 1.442695
    %v874 = vpow.pop %v873
    %v875 = vmul.f32 %v854, 1.442695
    %v876 = vpow.pop %v875
    %v877 = vmul.f32 %v855, 1.442695
    %v878 = vpow.pop %v877
    %v879 = vmul.f32 %v856, 1.442695
    %v880 = vpow.pop %v879
    %v881 = vmul.f32 %v857, 1.442695
    %v882 = vpow.pop %v881
    %v883 = vmul.f32 %v858, 1.442695
    %v884 = vpow.pop %v883
    %v885 = vmul.f32 %v859, 1.442695
    %v886 = vpow.pop %v885
    %v887 = vmul.f32 %v860, 1.442695
    %v888 = vpow.pop %v887
    %v889 = vmul.f32 %v861, 1.442695
    %v890 = vpow.pop %v889
    %v891 = vmul.f32 %v862, 1.442695
    %v892 = vpow.pop %v891
    %v893 = vmul.f32 %v863, 1.442695
    %v894 = vpow.pop %v893
    %v895 = vmul.f32 %v864, 1.442695
    %v896 = vpow.pop %v895
    %897 = vadd.xlane.f32.xlu0 %v866
    %v898 = vpop.xlane.xlu0 %897
    %899 = vadd.xlane.f32.xlu0 %v868
    %v900 = vpop.xlane.xlu0 %899
    %901 = vadd.xlane.f32.xlu0 %v870
    %v902 = vpop.xlane.xlu0 %901
    %903 = vadd.xlane.f32.xlu0 %v872
    %v904 = vpop.xlane.xlu0 %903
    %905 = vadd.xlane.f32.xlu0 %v874
    %v906 = vpop.xlane.xlu0 %905
    %907 = vadd.xlane.f32.xlu0 %v876
    %v908 = vpop.xlane.xlu0 %907
    %909 = vadd.xlane.f32.xlu0 %v878
    %v910 = vpop.xlane.xlu0 %909
    %911 = vadd.xlane.f32.xlu0 %v880
    %v912 = vpop.xlane.xlu0 %911
    %913 = vadd.xlane.f32.xlu0 %v882
    %v914 = vpop.xlane.xlu0 %913
    %915 = vadd.xlane.f32.xlu0 %v884
    %v916 = vpop.xlane.xlu0 %915
    %917 = vadd.xlane.f32.xlu0 %v886
    %v918 = vpop.xlane.xlu0 %917
    %919 = vadd.xlane.f32.xlu0 %v888
    %v920 = vpop.xlane.xlu0 %919
    %921 = vadd.xlane.f32.xlu0 %v890
    %v922 = vpop.xlane.xlu0 %921
    %923 = vadd.xlane.f32.xlu0 %v892
    %v924 = vpop.xlane.xlu0 %923
    %925 = vadd.xlane.f32.xlu0 %v894
    %v926 = vpop.xlane.xlu0 %925
    %927 = vadd.xlane.f32.xlu0 %v896
    %v928 = vpop.xlane.xlu0 %927
    %v929 = vrcp.pop %v898
    %v930 = vrcp.pop %v900
    %v931 = vrcp.pop %v902
    %v932 = vrcp.pop %v904
    %v933 = vrcp.pop %v906
    %v934 = vrcp.pop %v908
    %v935 = vrcp.pop %v910
    %v936 = vrcp.pop %v912
    %v937 = vrcp.pop %v914
    %v938 = vrcp.pop %v916
    %v939 = vrcp.pop %v918
    %v940 = vrcp.pop %v920
    %v941 = vrcp.pop %v922
    %v942 = vrcp.pop %v924
    %v943 = vrcp.pop %v926
    %v944 = vrcp.pop %v928
    %v945 = vmul.f32 %v866, %v929
    %v946 = vmul.f32 %v868, %v930
    %v947 = vmul.f32 %v870, %v931
    %v948 = vmul.f32 %v872, %v932
    %v949 = vmul.f32 %v874, %v933
    %v950 = vmul.f32 %v876, %v934
    %v951 = vmul.f32 %v878, %v935
    %v952 = vmul.f32 %v880, %v936
    %v953 = vmul.f32 %v882, %v937
    %v954 = vmul.f32 %v884, %v938
    %v955 = vmul.f32 %v886, %v939
    %v956 = vmul.f32 %v888, %v940
    %v957 = vmul.f32 %v890, %v941
    %v958 = vmul.f32 %v892, %v942
    %v959 = vmul.f32 %v894, %v943
    %v960 = vmul.f32 %v896, %v944
    %v961 = vpack.c.bf16 %v784, %v779
    %v962 = vpack.c.bf16 %v794, %v789
    %v963 = vpack.c.bf16 %v946, %v945
    %v964 = vpack.c.bf16 %v948, %v947
    %v965 = vpack.c.bf16 %v950, %v949
    %v966 = vpack.c.bf16 %v952, %v951
    %v967 = vpack.c.bf16 %v954, %v953
    %v968 = vpack.c.bf16 %v956, %v955
    %v969 = vpack.c.bf16 %v958, %v957
    %v970 = vpack.c.bf16 %v960, %v959
    %971 = vmatprep.subr.bf16.mxu0 0
    %972 = vmatpush1.bf16.msra.mxu0 %v970
    %973 = vmatprep.subr.bf16.mxu0 0
    %974 = vmatpush1.bf16.msra.mxu0 %v969
    %975 = vmatprep.subr.bf16.mxu0 0
    %976 = vmatpush1.bf16.msra.mxu0 %v968
    %977 = vmatprep.subr.bf16.mxu0 0
    %978 = vmatpush1.bf16.msra.mxu0 %v967
    %979 = vmatprep.subr.bf16.mxu0 0
    %980 = vmatpush1.bf16.msra.mxu0 %v966
    %981 = vmatprep.subr.bf16.mxu0 0
    %982 = vmatpush1.bf16.msra.mxu0 %v965
    %983 = vmatprep.subr.bf16.mxu0 0
    %984 = vmatpush1.bf16.msra.mxu0 %v964
    %985 = vmatprep.subr.bf16.mxu0 0
    %986 = vmatpush1.bf16.msra.mxu0 %v963
    %987 = vmatprep.subr.bf16.mxu0 0
    %988 = vmatpush2.bf16.msra.mxu0 0
    %989 = vmatprep.subr.bf16.mxu0 0
    %990 = vmatpush2.bf16.msra.mxu0 0
    %991 = vmatprep.subr.bf16.mxu0 0
    %992 = vmatpush2.bf16.msra.mxu0 0
    %993 = vmatprep.subr.bf16.mxu0 0
    %994 = vmatpush2.bf16.msra.mxu0 0
    %995 = vmatprep.subr.bf16.mxu0 0
    %996 = vmatpush2.bf16.msra.mxu0 0
    %997 = vmatprep.subr.bf16.mxu0 0
    %998 = vmatpush2.bf16.msra.mxu0 0
    %999 = vmatprep.subr.bf16.mxu0 0
    %1000 = vmatpush2.bf16.msra.mxu0 0
    %1001 = vmatprep.subr.bf16.mxu0 0
    %1002 = vmatpush2.bf16.msra.mxu0 0
    %1003 = vmatprep.mubr.bf16.mxu0 0
    %1004 = vmatmul.mubr.bf16.gmra.mxu0 %v961
    %v1005 = vpop.f32.mrf.mxu0
    %v1006 = vadd.f32 0.0, %v1005
    %v1007 = vpop.f32.mrf.mxu0
    %v1008 = vpop.f32.mrf.mxu0
    %v1009 = vadd.f32 0.0, %v1008
    %v1010 = vpop.f32.mrf.mxu0
    %1011 = vmatprep.mubr.bf16.mxu0 0
    %1012 = vmatmul.mubr.bf16.gmra.mxu0 %v962
    %v1013 = vpop.f32.mrf.mxu0
    %v1014 = vadd.f32 0.0, %v1013
    %v1015 = vpop.f32.mrf.mxu0
    %v1016 = vpop.f32.mrf.mxu0
    %v1017 = vadd.f32 0.0, %v1016
    %v1018 = vpop.f32.mrf.mxu0
    %1019 = vdwg.mxu0
    %v1020 = vadd.f32 %v696, %v1006
    %v1021 = vadd.f32 %v699, %v1009
    %v1022 = vadd.f32 %v704, %v1014
    %v1023 = vadd.f32 %v707, %v1017
    %1025 = vset.pattern.permute.xlu0 0
    %1026 = vperm.xlu0 %1025, %v62
    %v1027 = vpop.permute.xlu0 %1026
    %1030 = vset.pattern.permute.xlu0 0
    %1031 = vperm.xlu0 %1030, %v63
    %v1032 = vpop.permute.xlu0 %1031
    %1035 = vset.pattern.permute.xlu0 0
    %1036 = vperm.xlu0 %1035, %v64
    %v1037 = vpop.permute.xlu0 %1036
    %1040 = vset.pattern.permute.xlu0 0
    %1041 = vperm.xlu0 %1040, %v65
    %v1042 = vpop.permute.xlu0 %1041
    %1045 = vset.pattern.permute.xlu0 0
    %1046 = vperm.xlu0 %1045, %v66
    %v1047 = vpop.permute.xlu0 %1046
    %1050 = vset.pattern.permute.xlu0 0
    %1051 = vperm.xlu0 %1050, %v67
    %v1052 = vpop.permute.xlu0 %1051
    %1055 = vset.pattern.permute.xlu0 0
    %1056 = vperm.xlu0 %1055, %v68
    %v1057 = vpop.permute.xlu0 %1056
    %1060 = vset.pattern.permute.xlu0 0
    %1061 = vperm.xlu0 %1060, %v69
    %v1062 = vpop.permute.xlu0 %1061
    %1065 = vset.pattern.permute.xlu0 0
    %1066 = vperm.xlu0 %1065, %v70
    %v1067 = vpop.permute.xlu0 %1066
    %1070 = vset.pattern.permute.xlu0 0
    %1071 = vperm.xlu0 %1070, %v71
    %v1072 = vpop.permute.xlu0 %1071
    %1075 = vset.pattern.permute.xlu0 0
    %1076 = vperm.xlu0 %1075, %v72
    %v1077 = vpop.permute.xlu0 %1076
    %1080 = vset.pattern.permute.xlu0 0
    %1081 = vperm.xlu0 %1080, %v73
    %v1082 = vpop.permute.xlu0 %1081
    %1085 = vset.pattern.permute.xlu0 0
    %1086 = vperm.xlu0 %1085, %v74
    %v1087 = vpop.permute.xlu0 %1086
    %1090 = vset.pattern.permute.xlu0 0
    %1091 = vperm.xlu0 %1090, %v75
    %v1092 = vpop.permute.xlu0 %1091
    %1095 = vset.pattern.permute.xlu0 0
    %1096 = vperm.xlu0 %1095, %v76
    %v1097 = vpop.permute.xlu0 %1096
    %1100 = vset.pattern.permute.xlu0 0
    %1101 = vperm.xlu0 %1100, %v77
    %v1102 = vpop.permute.xlu0 %1101
    %v1104 = vsub.f32 %v45, %v1027
    %v1105 = vsub.f32 %v46, %v1032
    %v1106 = vsub.f32 %v47, %v1037
    %v1107 = vsub.f32 %v48, %v1042
    %v1108 = vsub.f32 %v49, %v1047
    %v1109 = vsub.f32 %v50, %v1052
    %v1110 = vsub.f32 %v51, %v1057
    %v1111 = vsub.f32 %v52, %v1062
    %v1112 = vsub.f32 %v53, %v1067
    %v1113 = vsub.f32 %v54, %v1072
    %v1114 = vsub.f32 %v55, %v1077
    %v1115 = vsub.f32 %v56, %v1082
    %v1116 = vsub.f32 %v57, %v1087
    %v1117 = vsub.f32 %v58, %v1092
    %v1118 = vsub.f32 %v59, %v1097
    %v1119 = vsub.f32 %v60, %v1102
    %1120 = vmax.xlane.f32.xlu0 %v1104
    %v1121 = vpop.xlane.xlu0 %1120
    %1122 = vmax.xlane.f32.xlu0 %v1105
    %v1123 = vpop.xlane.xlu0 %1122
    %1124 = vmax.xlane.f32.xlu0 %v1106
    %v1125 = vpop.xlane.xlu0 %1124
    %1126 = vmax.xlane.f32.xlu0 %v1107
    %v1127 = vpop.xlane.xlu0 %1126
    %1128 = vmax.xlane.f32.xlu0 %v1108
    %v1129 = vpop.xlane.xlu0 %1128
    %1130 = vmax.xlane.f32.xlu0 %v1109
    %v1131 = vpop.xlane.xlu0 %1130
    %1132 = vmax.xlane.f32.xlu0 %v1110
    %v1133 = vpop.xlane.xlu0 %1132
    %1134 = vmax.xlane.f32.xlu0 %v1111
    %v1135 = vpop.xlane.xlu0 %1134
    %1136 = vmax.xlane.f32.xlu0 %v1112
    %v1137 = vpop.xlane.xlu0 %1136
    %1138 = vmax.xlane.f32.xlu0 %v1113
    %v1139 = vpop.xlane.xlu0 %1138
    %1140 = vmax.xlane.f32.xlu0 %v1114
    %v1141 = vpop.xlane.xlu0 %1140
    %1142 = vmax.xlane.f32.xlu0 %v1115
    %v1143 = vpop.xlane.xlu0 %1142
    %1144 = vmax.xlane.f32.xlu0 %v1116
    %v1145 = vpop.xlane.xlu0 %1144
    %1146 = vmax.xlane.f32.xlu0 %v1117
    %v1147 = vpop.xlane.xlu0 %1146
    %1148 = vmax.xlane.f32.xlu0 %v1118
    %v1149 = vpop.xlane.xlu0 %1148
    %1150 = vmax.xlane.f32.xlu0 %v1119
    %v1151 = vpop.xlane.xlu0 %1150
    %v1152 = vsub.f32 %v1104, %v1121
    %v1153 = vsub.f32 %v1105, %v1123
    %v1154 = vsub.f32 %v1106, %v1125
    %v1155 = vsub.f32 %v1107, %v1127
    %v1156 = vsub.f32 %v1108, %v1129
    %v1157 = vsub.f32 %v1109, %v1131
    %v1158 = vsub.f32 %v1110, %v1133
    %v1159 = vsub.f32 %v1111, %v1135
    %v1160 = vsub.f32 %v1112, %v1137
    %v1161 = vsub.f32 %v1113, %v1139
    %v1162 = vsub.f32 %v1114, %v1141
    %v1163 = vsub.f32 %v1115, %v1143
    %v1164 = vsub.f32 %v1116, %v1145
    %v1165 = vsub.f32 %v1117, %v1147
    %v1166 = vsub.f32 %v1118, %v1149
    %v1167 = vsub.f32 %v1119, %v1151
    %v1168 = vmul.f32 %v1152, 1.442695
    %v1169 = vpow.pop %v1168
    %v1170 = vmul.f32 %v1153, 1.442695
    %v1171 = vpow.pop %v1170
    %v1172 = vmul.f32 %v1154, 1.442695
    %v1173 = vpow.pop %v1172
    %v1174 = vmul.f32 %v1155, 1.442695
    %v1175 = vpow.pop %v1174
    %v1176 = vmul.f32 %v1156, 1.442695
    %v1177 = vpow.pop %v1176
    %v1178 = vmul.f32 %v1157, 1.442695
    %v1179 = vpow.pop %v1178
    %v1180 = vmul.f32 %v1158, 1.442695
    %v1181 = vpow.pop %v1180
    %v1182 = vmul.f32 %v1159, 1.442695
    %v1183 = vpow.pop %v1182
    %v1184 = vmul.f32 %v1160, 1.442695
    %v1185 = vpow.pop %v1184
    %v1186 = vmul.f32 %v1161, 1.442695
    %v1187 = vpow.pop %v1186
    %v1188 = vmul.f32 %v1162, 1.442695
    %v1189 = vpow.pop %v1188
    %v1190 = vmul.f32 %v1163, 1.442695
    %v1191 = vpow.pop %v1190
    %v1192 = vmul.f32 %v1164, 1.442695
    %v1193 = vpow.pop %v1192
    %v1194 = vmul.f32 %v1165, 1.442695
    %v1195 = vpow.pop %v1194
    %v1196 = vmul.f32 %v1166, 1.442695
    %v1197 = vpow.pop %v1196
    %v1198 = vmul.f32 %v1167, 1.442695
    %v1199 = vpow.pop %v1198
    %1200 = vadd.xlane.f32.xlu0 %v1169
    %v1201 = vpop.xlane.xlu0 %1200
    %1202 = vadd.xlane.f32.xlu0 %v1171
    %v1203 = vpop.xlane.xlu0 %1202
    %1204 = vadd.xlane.f32.xlu0 %v1173
    %v1205 = vpop.xlane.xlu0 %1204
    %1206 = vadd.xlane.f32.xlu0 %v1175
    %v1207 = vpop.xlane.xlu0 %1206
    %1208 = vadd.xlane.f32.xlu0 %v1177
    %v1209 = vpop.xlane.xlu0 %1208
    %1210 = vadd.xlane.f32.xlu0 %v1179
    %v1211 = vpop.xlane.xlu0 %1210
    %1212 = vadd.xlane.f32.xlu0 %v1181
    %v1213 = vpop.xlane.xlu0 %1212
    %1214 = vadd.xlane.f32.xlu0 %v1183
    %v1215 = vpop.xlane.xlu0 %1214
    %1216 = vadd.xlane.f32.xlu0 %v1185
    %v1217 = vpop.xlane.xlu0 %1216
    %1218 = vadd.xlane.f32.xlu0 %v1187
    %v1219 = vpop.xlane.xlu0 %1218
    %1220 = vadd.xlane.f32.xlu0 %v1189
    %v1221 = vpop.xlane.xlu0 %1220
    %1222 = vadd.xlane.f32.xlu0 %v1191
    %v1223 = vpop.xlane.xlu0 %1222
    %1224 = vadd.xlane.f32.xlu0 %v1193
    %v1225 = vpop.xlane.xlu0 %1224
    %1226 = vadd.xlane.f32.xlu0 %v1195
    %v1227 = vpop.xlane.xlu0 %1226
    %1228 = vadd.xlane.f32.xlu0 %v1197
    %v1229 = vpop.xlane.xlu0 %1228
    %1230 = vadd.xlane.f32.xlu0 %v1199
    %v1231 = vpop.xlane.xlu0 %1230
    %v1232 = vrcp.pop %v1201
    %v1233 = vrcp.pop %v1203
    %v1234 = vrcp.pop %v1205
    %v1235 = vrcp.pop %v1207
    %v1236 = vrcp.pop %v1209
    %v1237 = vrcp.pop %v1211
    %v1238 = vrcp.pop %v1213
    %v1239 = vrcp.pop %v1215
    %v1240 = vrcp.pop %v1217
    %v1241 = vrcp.pop %v1219
    %v1242 = vrcp.pop %v1221
    %v1243 = vrcp.pop %v1223
    %v1244 = vrcp.pop %v1225
    %v1245 = vrcp.pop %v1227
    %v1246 = vrcp.pop %v1229
    %v1247 = vrcp.pop %v1231
    %v1248 = vmul.f32 %v1169, %v1232
    %v1249 = vmul.f32 %v1171, %v1233
    %v1250 = vmul.f32 %v1173, %v1234
    %v1251 = vmul.f32 %v1175, %v1235
    %v1252 = vmul.f32 %v1177, %v1236
    %v1253 = vmul.f32 %v1179, %v1237
    %v1254 = vmul.f32 %v1181, %v1238
    %v1255 = vmul.f32 %v1183, %v1239
    %v1256 = vmul.f32 %v1185, %v1240
    %v1257 = vmul.f32 %v1187, %v1241
    %v1258 = vmul.f32 %v1189, %v1242
    %v1259 = vmul.f32 %v1191, %v1243
    %v1260 = vmul.f32 %v1193, %v1244
    %v1261 = vmul.f32 %v1195, %v1245
    %v1262 = vmul.f32 %v1197, %v1246
    %v1263 = vmul.f32 %v1199, %v1247
    %v1264 = vpack.c.bf16 %v1021, %v1020
    %v1265 = vpack.c.bf16 %v1023, %v1022
    %v1266 = vpack.c.bf16 %v1249, %v1248
    %v1267 = vpack.c.bf16 %v1251, %v1250
    %v1268 = vpack.c.bf16 %v1253, %v1252
    %v1269 = vpack.c.bf16 %v1255, %v1254
    %v1270 = vpack.c.bf16 %v1257, %v1256
    %v1271 = vpack.c.bf16 %v1259, %v1258
    %v1272 = vpack.c.bf16 %v1261, %v1260
    %v1273 = vpack.c.bf16 %v1263, %v1262
    %1274 = vmatprep.subr.bf16.mxu0 0
    %1275 = vmatpush1.bf16.msra.mxu0 %v1273
    %1276 = vmatprep.subr.bf16.mxu0 0
    %1277 = vmatpush1.bf16.msra.mxu0 %v1272
    %1278 = vmatprep.subr.bf16.mxu0 0
    %1279 = vmatpush1.bf16.msra.mxu0 %v1271
    %1280 = vmatprep.subr.bf16.mxu0 0
    %1281 = vmatpush1.bf16.msra.mxu0 %v1270
    %1282 = vmatprep.subr.bf16.mxu0 0
    %1283 = vmatpush1.bf16.msra.mxu0 %v1269
    %1284 = vmatprep.subr.bf16.mxu0 0
    %1285 = vmatpush1.bf16.msra.mxu0 %v1268
    %1286 = vmatprep.subr.bf16.mxu0 0
    %1287 = vmatpush1.bf16.msra.mxu0 %v1267
    %1288 = vmatprep.subr.bf16.mxu0 0
    %1289 = vmatpush1.bf16.msra.mxu0 %v1266
    %1290 = vmatprep.subr.bf16.mxu0 0
    %1291 = vmatpush2.bf16.msra.mxu0 0
    %1292 = vmatprep.subr.bf16.mxu0 0
    %1293 = vmatpush2.bf16.msra.mxu0 0
    %1294 = vmatprep.subr.bf16.mxu0 0
    %1295 = vmatpush2.bf16.msra.mxu0 0
    %1296 = vmatprep.subr.bf16.mxu0 0
    %1297 = vmatpush2.bf16.msra.mxu0 0
    %1298 = vmatprep.subr.bf16.mxu0 0
    %1299 = vmatpush2.bf16.msra.mxu0 0
    %1300 = vmatprep.subr.bf16.mxu0 0
    %1301 = vmatpush2.bf16.msra.mxu0 0
    %1302 = vmatprep.subr.bf16.mxu0 0
    %1303 = vmatpush2.bf16.msra.mxu0 0
    %1304 = vmatprep.subr.bf16.mxu0 0
    %1305 = vmatpush2.bf16.msra.mxu0 0
    %1306 = vmatprep.mubr.bf16.mxu0 0
    %1307 = vmatmul.mubr.bf16.gmra.mxu0 %v1264
    %v1308 = vpop.f32.mrf.mxu0
    %v1309 = vadd.f32 0.0, %v1308
    %v1310 = vpop.f32.mrf.mxu0
    %v1311 = vpop.f32.mrf.mxu0
    %v1312 = vadd.f32 0.0, %v1311
    %v1313 = vpop.f32.mrf.mxu0
    %1314 = vmatprep.mubr.bf16.mxu0 0
    %1315 = vmatmul.mubr.bf16.gmra.mxu0 %v1265
    %v1316 = vpop.f32.mrf.mxu0
    %v1317 = vadd.f32 0.0, %v1316
    %v1318 = vpop.f32.mrf.mxu0
    %v1319 = vpop.f32.mrf.mxu0
    %v1320 = vadd.f32 0.0, %v1319
    %v1321 = vpop.f32.mrf.mxu0
    %1322 = vdwg.mxu0
    %v1323 = vsub.f32 0.0, %v1309
    %v1324 = vsub.f32 0.0, %v1312
    %v1325 = vsub.f32 0.0, %v1317
    %v1326 = vsub.f32 0.0, %v1320
    %v1327 = vmul.f32 %v1323, 1.442695
    %v1328 = vpow.pop %v1327
    %v1329 = vmul.f32 %v1324, 1.442695
    %v1330 = vpow.pop %v1329
    %v1331 = vmul.f32 %v1325, 1.442695
    %v1332 = vpow.pop %v1331
    %v1333 = vmul.f32 %v1326, 1.442695
    %v1334 = vpow.pop %v1333
    %v1335 = vadd.f32 %v1328, 1.0
    %v1336 = vadd.f32 %v1330, 1.0
    %v1337 = vadd.f32 %v1332, 1.0
    %v1338 = vadd.f32 %v1334, 1.0
    %v1339 = vrcp.pop %v1335
    %v1340 = vrcp.pop %v1336
    %v1341 = vrcp.pop %v1337
    %v1342 = vrcp.pop %v1338
    %1343 = vst [vmem:[#allocation2] sm:$0xff] %v1339
    %1344 = vst [vmem:[#allocation2 + $0x8] sm:$0xff] %v1340
    %1345 = vst [vmem:[#allocation2 + $0x10] sm:$0xff] %v1341
    %1346 = vst [vmem:[#allocation2 + $0x18] sm:$0xff] %v1342
    %s1347 = scalar_lea.vmem %s0, 24
    %v1348 = vld [vmem:[%s1347] sm:$0xff]
    %1349 = vmatprep.subr.mxu0 0.0
    %1350 = vmatpush1.msra.mxu0 0.0
    %1351 = vmatprep.subr.mxu0 0.0
    %1352 = vmatpush1.msra.mxu0 0.0
    %1353 = vmatprep.subr.mxu0 0.0
    %1354 = vmatpush1.msra.mxu0 0.0
    %1355 = vmatprep.subr.mxu0 0.0
    %1356 = vmatpush1.msra.mxu0 0.0
    %1357 = vmatprep.subr.mxu0 0.0
    %1358 = vmatpush1.msra.mxu0 0.0
    %1359 = vmatprep.subr.mxu0 0.0
    %1360 = vmatpush1.msra.mxu0 0.0
    %1361 = vmatprep.subr.mxu0 0.0
    %1362 = vmatpush1.msra.mxu0 0.0
    %1363 = vmatprep.subr.mxu0 0.0
    %1364 = vmatpush1.msra.mxu0 0.0
    %1365 = vmatprep.subr.mxu0 0.0
    %1366 = vmatpush1.msra.mxu0 0.0
    %1367 = vmatprep.subr.mxu0 0.0
    %1368 = vmatpush1.msra.mxu0 0.0
    %1369 = vmatprep.subr.mxu0 0.0
    %1370 = vmatpush1.msra.mxu0 0.0
    %1371 = vmatprep.subr.mxu0 0.0
    %1372 = vmatpush1.msra.mxu0 0.0
    %1373 = vmatprep.subr.mxu0 0.0
    %1374 = vmatpush1.msra.mxu0 0.0
    %1375 = vmatprep.subr.mxu0 0.0
    %1376 = vmatpush1.msra.mxu0 0.0
    %1377 = vmatprep.subr.mxu0 0.0
    %1378 = vmatpush1.msra.mxu0 0.0
    %1379 = vmatprep.subr.mxu0 0.0
    %1380 = vmatpush1.msra.mxu0 %v1348
    %1381 = vmatprep.subr.mxu0 0.0
    %1382 = vmatpush2.msra.mxu0 0.0
    %1383 = vmatprep.subr.mxu0 0.0
    %1384 = vmatpush2.msra.mxu0 0.0
    %1385 = vmatprep.subr.mxu0 0.0
    %1386 = vmatpush2.msra.mxu0 0.0
    %1387 = vmatprep.subr.mxu0 0.0
    %1388 = vmatpush2.msra.mxu0 0.0
    %1389 = vmatprep.subr.mxu0 0.0
    %1390 = vmatpush2.msra.mxu0 0.0
    %1391 = vmatprep.subr.mxu0 0.0
    %1392 = vmatpush2.msra.mxu0 0.0
    %1393 = vmatprep.subr.mxu0 0.0
    %1394 = vmatpush2.msra.mxu0 0.0
    %1395 = vmatprep.subr.mxu0 0.0
    %1396 = vmatpush2.msra.mxu0 0.0
    %1397 = vmatprep.subr.mxu0 0.0
    %1398 = vmatpush2.msra.mxu0 0.0
    %1399 = vmatprep.subr.mxu0 0.0
    %1400 = vmatpush2.msra.mxu0 0.0
    %1401 = vmatprep.subr.mxu0 0.0
    %1402 = vmatpush2.msra.mxu0 0.0
    %1403 = vmatprep.subr.mxu0 0.0
    %1404 = vmatpush2.msra.mxu0 0.0
    %1405 = vmatprep.subr.mxu0 0.0
    %1406 = vmatpush2.msra.mxu0 0.0
    %1407 = vmatprep.subr.mxu0 0.0
    %1408 = vmatpush2.msra.mxu0 0.0
    %1409 = vmatprep.subr.mxu0 0.0
    %1410 = vmatpush2.msra.mxu0 0.0
    %1411 = vmatprep.subr.mxu0 0.0
    %1412 = vmatpush2.msra.mxu0 0.0
    %1413 = vmatprep.mubr.f32.mxu0 0.0
    %1414 = vmatmul.mubr.f32.gmra.mxu0 %v81
    %v1415 = vpop.f32.mrf.mxu0
    %v1416 = vadd.f32 0.0, %v1415
    %v1417 = vpop.f32.mrf.mxu0
    %1418 = vmatprep.mubr.f32.mxu0 0.0
    %1419 = vmatmul.mubr.f32.gmra.mxu0 %v84
    %v1420 = vpop.f32.mrf.mxu0
    %v1421 = vadd.f32 0.0, %v1420
    %v1422 = vpop.f32.mrf.mxu0
    %1423 = vmatprep.mubr.f32.mxu0 0.0
    %1424 = vmatmul.mubr.f32.gmra.mxu0 %v87
    %v1425 = vpop.f32.mrf.mxu0
    %v1426 = vadd.f32 0.0, %v1425
    %v1427 = vpop.f32.mrf.mxu0
    %1428 = vmatprep.mubr.f32.mxu0 0.0
    %1429 = vmatmul.mubr.f32.gmra.mxu0 %v90
    %v1430 = vpop.f32.mrf.mxu0
    %v1431 = vadd.f32 0.0, %v1430
    %v1432 = vpop.f32.mrf.mxu0
    %1433 = vdwg.mxu0
    %v1434 = vlaneseq
    %v1435 = vshrl.u32 %v1434, 7
    %v1436 = vsub.s32 3, %v1435
    %v1437 = vrot.slane %v61, %v1436
    %v1438 = vsub.f32 %v29, %v1437
    %v1439 = vsub.f32 %v30, %v1437
    %v1440 = vsub.f32 %v31, %v1437
    %v1441 = vsub.f32 %v32, %v1437
    %v1442 = vsub.f32 %v33, %v1437
    %v1443 = vsub.f32 %v34, %v1437
    %v1444 = vsub.f32 %v35, %v1437
    %v1445 = vsub.f32 %v36, %v1437
    %v1446 = vsub.f32 %v37, %v1437
    %v1447 = vsub.f32 %v38, %v1437
    %v1448 = vsub.f32 %v39, %v1437
    %v1449 = vsub.f32 %v40, %v1437
    %v1450 = vsub.f32 %v41, %v1437
    %v1451 = vsub.f32 %v42, %v1437
    %v1452 = vsub.f32 %v43, %v1437
    %v1453 = vsub.f32 %v44, %v1437
    %1454 = vmax.xlane.f32.xlu0 %v1438
    %v1455 = vpop.xlane.xlu0 %1454
    %1456 = vmax.xlane.f32.xlu0 %v1439
    %v1457 = vpop.xlane.xlu0 %1456
    %1458 = vmax.xlane.f32.xlu0 %v1440
    %v1459 = vpop.xlane.xlu0 %1458
    %1460 = vmax.xlane.f32.xlu0 %v1441
    %v1461 = vpop.xlane.xlu0 %1460
    %1462 = vmax.xlane.f32.xlu0 %v1442
    %v1463 = vpop.xlane.xlu0 %1462
    %1464 = vmax.xlane.f32.xlu0 %v1443
    %v1465 = vpop.xlane.xlu0 %1464
    %1466 = vmax.xlane.f32.xlu0 %v1444
    %v1467 = vpop.xlane.xlu0 %1466
    %1468 = vmax.xlane.f32.xlu0 %v1445
    %v1469 = vpop.xlane.xlu0 %1468
    %1470 = vmax.xlane.f32.xlu0 %v1446
    %v1471 = vpop.xlane.xlu0 %1470
    %1472 = vmax.xlane.f32.xlu0 %v1447
    %v1473 = vpop.xlane.xlu0 %1472
    %1474 = vmax.xlane.f32.xlu0 %v1448
    %v1475 = vpop.xlane.xlu0 %1474
    %1476 = vmax.xlane.f32.xlu0 %v1449
    %v1477 = vpop.xlane.xlu0 %1476
    %1478 = vmax.xlane.f32.xlu0 %v1450
    %v1479 = vpop.xlane.xlu0 %1478
    %1480 = vmax.xlane.f32.xlu0 %v1451
    %v1481 = vpop.xlane.xlu0 %1480
    %1482 = vmax.xlane.f32.xlu0 %v1452
    %v1483 = vpop.xlane.xlu0 %1482
    %1484 = vmax.xlane.f32.xlu0 %v1453
    %v1485 = vpop.xlane.xlu0 %1484
    %v1486 = vsub.f32 %v1438, %v1455
    %v1487 = vsub.f32 %v1439, %v1457
    %v1488 = vsub.f32 %v1440, %v1459
    %v1489 = vsub.f32 %v1441, %v1461
    %v1490 = vsub.f32 %v1442, %v1463
    %v1491 = vsub.f32 %v1443, %v1465
    %v1492 = vsub.f32 %v1444, %v1467
    %v1493 = vsub.f32 %v1445, %v1469
    %v1494 = vsub.f32 %v1446, %v1471
    %v1495 = vsub.f32 %v1447, %v1473
    %v1496 = vsub.f32 %v1448, %v1475
    %v1497 = vsub.f32 %v1449, %v1477
    %v1498 = vsub.f32 %v1450, %v1479
    %v1499 = vsub.f32 %v1451, %v1481
    %v1500 = vsub.f32 %v1452, %v1483
    %v1501 = vsub.f32 %v1453, %v1485
    %v1502 = vmul.f32 %v1486, 1.442695
    %v1503 = vpow.pop %v1502
    %v1504 = vmul.f32 %v1487, 1.442695
    %v1505 = vpow.pop %v1504
    %v1506 = vmul.f32 %v1488, 1.442695
    %v1507 = vpow.pop %v1506
    %v1508 = vmul.f32 %v1489, 1.442695
    %v1509 = vpow.pop %v1508
    %v1510 = vmul.f32 %v1490, 1.442695
    %v1511 = vpow.pop %v1510
    %v1512 = vmul.f32 %v1491, 1.442695
    %v1513 = vpow.pop %v1512
    %v1514 = vmul.f32 %v1492, 1.442695
    %v1515 = vpow.pop %v1514
    %v1516 = vmul.f32 %v1493, 1.442695
    %v1517 = vpow.pop %v1516
    %v1518 = vmul.f32 %v1494, 1.442695
    %v1519 = vpow.pop %v1518
    %v1520 = vmul.f32 %v1495, 1.442695
    %v1521 = vpow.pop %v1520
    %v1522 = vmul.f32 %v1496, 1.442695
    %v1523 = vpow.pop %v1522
    %v1524 = vmul.f32 %v1497, 1.442695
    %v1525 = vpow.pop %v1524
    %v1526 = vmul.f32 %v1498, 1.442695
    %v1527 = vpow.pop %v1526
    %v1528 = vmul.f32 %v1499, 1.442695
    %v1529 = vpow.pop %v1528
    %v1530 = vmul.f32 %v1500, 1.442695
    %v1531 = vpow.pop %v1530
    %v1532 = vmul.f32 %v1501, 1.442695
    %v1533 = vpow.pop %v1532
    %1534 = vadd.xlane.f32.xlu0 %v1503
    %v1535 = vpop.xlane.xlu0 %1534
    %1536 = vadd.xlane.f32.xlu0 %v1505
    %v1537 = vpop.xlane.xlu0 %1536
    %1538 = vadd.xlane.f32.xlu0 %v1507
    %v1539 = vpop.xlane.xlu0 %1538
    %1540 = vadd.xlane.f32.xlu0 %v1509
    %v1541 = vpop.xlane.xlu0 %1540
    %1542 = vadd.xlane.f32.xlu0 %v1511
    %v1543 = vpop.xlane.xlu0 %1542
    %1544 = vadd.xlane.f32.xlu0 %v1513
    %v1545 = vpop.xlane.xlu0 %1544
    %1546 = vadd.xlane.f32.xlu0 %v1515
    %v1547 = vpop.xlane.xlu0 %1546
    %1548 = vadd.xlane.f32.xlu0 %v1517
    %v1549 = vpop.xlane.xlu0 %1548
    %1550 = vadd.xlane.f32.xlu0 %v1519
    %v1551 = vpop.xlane.xlu0 %1550
    %1552 = vadd.xlane.f32.xlu0 %v1521
    %v1553 = vpop.xlane.xlu0 %1552
    %1554 = vadd.xlane.f32.xlu0 %v1523
    %v1555 = vpop.xlane.xlu0 %1554
    %1556 = vadd.xlane.f32.xlu0 %v1525
    %v1557 = vpop.xlane.xlu0 %1556
    %1558 = vadd.xlane.f32.xlu0 %v1527
    %v1559 = vpop.xlane.xlu0 %1558
    %1560 = vadd.xlane.f32.xlu0 %v1529
    %v1561 = vpop.xlane.xlu0 %1560
    %1562 = vadd.xlane.f32.xlu0 %v1531
    %v1563 = vpop.xlane.xlu0 %1562
    %1564 = vadd.xlane.f32.xlu0 %v1533
    %v1565 = vpop.xlane.xlu0 %1564
    %v1566 = vrcp.pop %v1535
    %v1567 = vrcp.pop %v1537
    %v1568 = vrcp.pop %v1539
    %v1569 = vrcp.pop %v1541
    %v1570 = vrcp.pop %v1543
    %v1571 = vrcp.pop %v1545
    %v1572 = vrcp.pop %v1547
    %v1573 = vrcp.pop %v1549
    %v1574 = vrcp.pop %v1551
    %v1575 = vrcp.pop %v1553
    %v1576 = vrcp.pop %v1555
    %v1577 = vrcp.pop %v1557
    %v1578 = vrcp.pop %v1559
    %v1579 = vrcp.pop %v1561
    %v1580 = vrcp.pop %v1563
    %v1581 = vrcp.pop %v1565
    %v1582 = vmul.f32 %v1503, %v1566
    %v1583 = vmul.f32 %v1505, %v1567
    %v1584 = vmul.f32 %v1507, %v1568
    %v1585 = vmul.f32 %v1509, %v1569
    %v1586 = vmul.f32 %v1511, %v1570
    %v1587 = vmul.f32 %v1513, %v1571
    %v1588 = vmul.f32 %v1515, %v1572
    %v1589 = vmul.f32 %v1517, %v1573
    %v1590 = vmul.f32 %v1519, %v1574
    %v1591 = vmul.f32 %v1521, %v1575
    %v1592 = vmul.f32 %v1523, %v1576
    %v1593 = vmul.f32 %v1525, %v1577
    %v1594 = vmul.f32 %v1527, %v1578
    %v1595 = vmul.f32 %v1529, %v1579
    %v1596 = vmul.f32 %v1531, %v1580
    %v1597 = vmul.f32 %v1533, %v1581
    %v1598 = vpack.c.bf16 %v1421, %v1416
    %v1599 = vpack.c.bf16 %v1431, %v1426
    %v1600 = vpack.c.bf16 %v1583, %v1582
    %v1601 = vpack.c.bf16 %v1585, %v1584
    %v1602 = vpack.c.bf16 %v1587, %v1586
    %v1603 = vpack.c.bf16 %v1589, %v1588
    %v1604 = vpack.c.bf16 %v1591, %v1590
    %v1605 = vpack.c.bf16 %v1593, %v1592
    %v1606 = vpack.c.bf16 %v1595, %v1594
    %v1607 = vpack.c.bf16 %v1597, %v1596
    %s1608 = scalar_lea.vmem %s0, 32
    %v1609 = vld [vmem:[%s1608] sm:$0xff]
    %1610 = vmatprep.subr.mxu0 0.0
    %1611 = vmatpush1.msra.mxu0 0.0
    %1612 = vmatprep.subr.mxu0 0.0
    %1613 = vmatpush1.msra.mxu0 0.0
    %1614 = vmatprep.subr.mxu0 0.0
    %1615 = vmatpush1.msra.mxu0 0.0
    %1616 = vmatprep.subr.mxu0 0.0
    %1617 = vmatpush1.msra.mxu0 0.0
    %1618 = vmatprep.subr.mxu0 0.0
    %1619 = vmatpush1.msra.mxu0 0.0
    %1620 = vmatprep.subr.mxu0 0.0
    %1621 = vmatpush1.msra.mxu0 0.0
    %1622 = vmatprep.subr.mxu0 0.0
    %1623 = vmatpush1.msra.mxu0 0.0
    %1624 = vmatprep.subr.mxu0 0.0
    %1625 = vmatpush1.msra.mxu0 0.0
    %1626 = vmatprep.subr.mxu0 0.0
    %1627 = vmatpush1.msra.mxu0 0.0
    %1628 = vmatprep.subr.mxu0 0.0
    %1629 = vmatpush1.msra.mxu0 0.0
    %1630 = vmatprep.subr.mxu0 0.0
    %1631 = vmatpush1.msra.mxu0 0.0
    %1632 = vmatprep.subr.mxu0 0.0
    %1633 = vmatpush1.msra.mxu0 0.0
    %1634 = vmatprep.subr.mxu0 0.0
    %1635 = vmatpush1.msra.mxu0 0.0
    %1636 = vmatprep.subr.mxu0 0.0
    %1637 = vmatpush1.msra.mxu0 0.0
    %1638 = vmatprep.subr.mxu0 0.0
    %1639 = vmatpush1.msra.mxu0 0.0
    %1640 = vmatprep.subr.mxu0 0.0
    %1641 = vmatpush1.msra.mxu0 %v1609
    %1642 = vmatprep.subr.mxu0 0.0
    %1643 = vmatpush2.msra.mxu0 0.0
    %1644 = vmatprep.subr.mxu0 0.0
    %1645 = vmatpush2.msra.mxu0 0.0
    %1646 = vmatprep.subr.mxu0 0.0
    %1647 = vmatpush2.msra.mxu0 0.0
    %1648 = vmatprep.subr.mxu0 0.0
    %1649 = vmatpush2.msra.mxu0 0.0
    %1650 = vmatprep.subr.mxu0 0.0
    %1651 = vmatpush2.msra.mxu0 0.0
    %1652 = vmatprep.subr.mxu0 0.0
    %1653 = vmatpush2.msra.mxu0 0.0
    %1654 = vmatprep.subr.mxu0 0.0
    %1655 = vmatpush2.msra.mxu0 0.0
    %1656 = vmatprep.subr.mxu0 0.0
    %1657 = vmatpush2.msra.mxu0 0.0
    %1658 = vmatprep.subr.mxu0 0.0
    %1659 = vmatpush2.msra.mxu0 0.0
    %1660 = vmatprep.subr.mxu0 0.0
    %1661 = vmatpush2.msra.mxu0 0.0
    %1662 = vmatprep.subr.mxu0 0.0
    %1663 = vmatpush2.msra.mxu0 0.0
    %1664 = vmatprep.subr.mxu0 0.0
    %1665 = vmatpush2.msra.mxu0 0.0
    %1666 = vmatprep.subr.mxu0 0.0
    %1667 = vmatpush2.msra.mxu0 0.0
    %1668 = vmatprep.subr.mxu0 0.0
    %1669 = vmatpush2.msra.mxu0 0.0
    %1670 = vmatprep.subr.mxu0 0.0
    %1671 = vmatpush2.msra.mxu0 0.0
    %1672 = vmatprep.subr.mxu0 0.0
    %1673 = vmatpush2.msra.mxu0 0.0
    %1674 = vmatprep.mubr.f32.mxu0 0.0
    %1675 = vmatmul.mubr.f32.gmra.mxu0 %v81
    %v1676 = vpop.f32.mrf.mxu0
    %v1677 = vadd.f32 0.0, %v1676
    %v1678 = vpop.f32.mrf.mxu0
    %1679 = vmatprep.mubr.f32.mxu0 0.0
    %1680 = vmatmul.mubr.f32.gmra.mxu0 %v84
    %v1681 = vpop.f32.mrf.mxu0
    %v1682 = vadd.f32 0.0, %v1681
    %v1683 = vpop.f32.mrf.mxu0
    %1684 = vmatprep.mubr.f32.mxu0 0.0
    %1685 = vmatmul.mubr.f32.gmra.mxu0 %v87
    %v1686 = vpop.f32.mrf.mxu0
    %v1687 = vadd.f32 0.0, %v1686
    %v1688 = vpop.f32.mrf.mxu0
    %1689 = vmatprep.mubr.f32.mxu0 0.0
    %1690 = vmatmul.mubr.f32.gmra.mxu0 %v90
    %v1691 = vpop.f32.mrf.mxu0
    %v1692 = vadd.f32 0.0, %v1691
    %v1693 = vpop.f32.mrf.mxu0
    %1694 = vdwg.mxu0
    %v1695 = vlaneseq
    %v1696 = vshrl.u32 %v1695, 7
    %v1697 = vsub.s32 4, %v1696
    %v1698 = vrot.slane %v61, %v1697
    %v1699 = vsub.f32 %v29, %v1698
    %v1700 = vsub.f32 %v30, %v1698
    %v1701 = vsub.f32 %v31, %v1698
    %v1702 = vsub.f32 %v32, %v1698
    %v1703 = vsub.f32 %v33, %v1698
    %v1704 = vsub.f32 %v34, %v1698
    %v1705 = vsub.f32 %v35, %v1698
    %v1706 = vsub.f32 %v36, %v1698
    %v1707 = vsub.f32 %v37, %v1698
    %v1708 = vsub.f32 %v38, %v1698
    %v1709 = vsub.f32 %v39, %v1698
    %v1710 = vsub.f32 %v40, %v1698
    %v1711 = vsub.f32 %v41, %v1698
    %v1712 = vsub.f32 %v42, %v1698
    %v1713 = vsub.f32 %v43, %v1698
    %v1714 = vsub.f32 %v44, %v1698
    %1715 = vmax.xlane.f32.xlu0 %v1699
    %v1716 = vpop.xlane.xlu0 %1715
    %1717 = vmax.xlane.f32.xlu0 %v1700
    %v1718 = vpop.xlane.xlu0 %1717
    %1719 = vmax.xlane.f32.xlu0 %v1701
    %v1720 = vpop.xlane.xlu0 %1719
    %1721 = vmax.xlane.f32.xlu0 %v1702
    %v1722 = vpop.xlane.xlu0 %1721
    %1723 = vmax.xlane.f32.xlu0 %v1703
    %v1724 = vpop.xlane.xlu0 %1723
    %1725 = vmax.xlane.f32.xlu0 %v1704
    %v1726 = vpop.xlane.xlu0 %1725
    %1727 = vmax.xlane.f32.xlu0 %v1705
    %v1728 = vpop.xlane.xlu0 %1727
    %1729 = vmax.xlane.f32.xlu0 %v1706
    %v1730 = vpop.xlane.xlu0 %1729
    %1731 = vmax.xlane.f32.xlu0 %v1707
    %v1732 = vpop.xlane.xlu0 %1731
    %1733 = vmax.xlane.f32.xlu0 %v1708
    %v1734 = vpop.xlane.xlu0 %1733
    %1735 = vmax.xlane.f32.xlu0 %v1709
    %v1736 = vpop.xlane.xlu0 %1735
    %1737 = vmax.xlane.f32.xlu0 %v1710
    %v1738 = vpop.xlane.xlu0 %1737
    %1739 = vmax.xlane.f32.xlu0 %v1711
    %v1740 = vpop.xlane.xlu0 %1739
    %1741 = vmax.xlane.f32.xlu0 %v1712
    %v1742 = vpop.xlane.xlu0 %1741
    %1743 = vmax.xlane.f32.xlu0 %v1713
    %v1744 = vpop.xlane.xlu0 %1743
    %1745 = vmax.xlane.f32.xlu0 %v1714
    %v1746 = vpop.xlane.xlu0 %1745
    %v1747 = vsub.f32 %v1699, %v1716
    %v1748 = vsub.f32 %v1700, %v1718
    %v1749 = vsub.f32 %v1701, %v1720
    %v1750 = vsub.f32 %v1702, %v1722
    %v1751 = vsub.f32 %v1703, %v1724
    %v1752 = vsub.f32 %v1704, %v1726
    %v1753 = vsub.f32 %v1705, %v1728
    %v1754 = vsub.f32 %v1706, %v1730
    %v1755 = vsub.f32 %v1707, %v1732
    %v1756 = vsub.f32 %v1708, %v1734
    %v1757 = vsub.f32 %v1709, %v1736
    %v1758 = vsub.f32 %v1710, %v1738
    %v1759 = vsub.f32 %v1711, %v1740
    %v1760 = vsub.f32 %v1712, %v1742
    %v1761 = vsub.f32 %v1713, %v1744
    %v1762 = vsub.f32 %v1714, %v1746
    %v1763 = vmul.f32 %v1747, 1.442695
    %v1764 = vpow.pop %v1763
    %v1765 = vmul.f32 %v1748, 1.442695
    %v1766 = vpow.pop %v1765
    %v1767 = vmul.f32 %v1749, 1.442695
    %v1768 = vpow.pop %v1767
    %v1769 = vmul.f32 %v1750, 1.442695
    %v1770 = vpow.pop %v1769
    %v1771 = vmul.f32 %v1751, 1.442695
    %v1772 = vpow.pop %v1771
    %v1773 = vmul.f32 %v1752, 1.442695
    %v1774 = vpow.pop %v1773
    %v1775 = vmul.f32 %v1753, 1.442695
    %v1776 = vpow.pop %v1775
    %v1777 = vmul.f32 %v1754, 1.442695
    %v1778 = vpow.pop %v1777
    %v1779 = vmul.f32 %v1755, 1.442695
    %v1780 = vpow.pop %v1779
    %v1781 = vmul.f32 %v1756, 1.442695
    %v1782 = vpow.pop %v1781
    %v1783 = vmul.f32 %v1757, 1.442695
    %v1784 = vpow.pop %v1783
    %v1785 = vmul.f32 %v1758, 1.442695
    %v1786 = vpow.pop %v1785
    %v1787 = vmul.f32 %v1759, 1.442695
    %v1788 = vpow.pop %v1787
    %v1789 = vmul.f32 %v1760, 1.442695
    %v1790 = vpow.pop %v1789
    %v1791 = vmul.f32 %v1761, 1.442695
    %v1792 = vpow.pop %v1791
    %v1793 = vmul.f32 %v1762, 1.442695
    %v1794 = vpow.pop %v1793
    %1795 = vadd.xlane.f32.xlu0 %v1764
    %v1796 = vpop.xlane.xlu0 %1795
    %1797 = vadd.xlane.f32.xlu0 %v1766
    %v1798 = vpop.xlane.xlu0 %1797
    %1799 = vadd.xlane.f32.xlu0 %v1768
    %v1800 = vpop.xlane.xlu0 %1799
    %1801 = vadd.xlane.f32.xlu0 %v1770
    %v1802 = vpop.xlane.xlu0 %1801
    %1803 = vadd.xlane.f32.xlu0 %v1772
    %v1804 = vpop.xlane.xlu0 %1803
    %1805 = vadd.xlane.f32.xlu0 %v1774
    %v1806 = vpop.xlane.xlu0 %1805
    %1807 = vadd.xlane.f32.xlu0 %v1776
    %v1808 = vpop.xlane.xlu0 %1807
    %1809 = vadd.xlane.f32.xlu0 %v1778
    %v1810 = vpop.xlane.xlu0 %1809
    %1811 = vadd.xlane.f32.xlu0 %v1780
    %v1812 = vpop.xlane.xlu0 %1811
    %1813 = vadd.xlane.f32.xlu0 %v1782
    %v1814 = vpop.xlane.xlu0 %1813
    %1815 = vadd.xlane.f32.xlu0 %v1784
    %v1816 = vpop.xlane.xlu0 %1815
    %1817 = vadd.xlane.f32.xlu0 %v1786
    %v1818 = vpop.xlane.xlu0 %1817
    %1819 = vadd.xlane.f32.xlu0 %v1788
    %v1820 = vpop.xlane.xlu0 %1819
    %1821 = vadd.xlane.f32.xlu0 %v1790
    %v1822 = vpop.xlane.xlu0 %1821
    %1823 = vadd.xlane.f32.xlu0 %v1792
    %v1824 = vpop.xlane.xlu0 %1823
    %1825 = vadd.xlane.f32.xlu0 %v1794
    %v1826 = vpop.xlane.xlu0 %1825
    %v1827 = vrcp.pop %v1796
    %v1828 = vrcp.pop %v1798
    %v1829 = vrcp.pop %v1800
    %v1830 = vrcp.pop %v1802
    %v1831 = vrcp.pop %v1804
    %v1832 = vrcp.pop %v1806
    %v1833 = vrcp.pop %v1808
    %v1834 = vrcp.pop %v1810
    %v1835 = vrcp.pop %v1812
    %v1836 = vrcp.pop %v1814
    %v1837 = vrcp.pop %v1816
    %v1838 = vrcp.pop %v1818
    %v1839 = vrcp.pop %v1820
    %v1840 = vrcp.pop %v1822
    %v1841 = vrcp.pop %v1824
    %v1842 = vrcp.pop %v1826
    %v1843 = vmul.f32 %v1764, %v1827
    %v1844 = vmul.f32 %v1766, %v1828
    %v1845 = vmul.f32 %v1768, %v1829
    %v1846 = vmul.f32 %v1770, %v1830
    %v1847 = vmul.f32 %v1772, %v1831
    %v1848 = vmul.f32 %v1774, %v1832
    %v1849 = vmul.f32 %v1776, %v1833
    %v1850 = vmul.f32 %v1778, %v1834
    %v1851 = vmul.f32 %v1780, %v1835
    %v1852 = vmul.f32 %v1782, %v1836
    %v1853 = vmul.f32 %v1784, %v1837
    %v1854 = vmul.f32 %v1786, %v1838
    %v1855 = vmul.f32 %v1788, %v1839
    %v1856 = vmul.f32 %v1790, %v1840
    %v1857 = vmul.f32 %v1792, %v1841
    %v1858 = vmul.f32 %v1794, %v1842
    %v1859 = vpack.c.bf16 %v1682, %v1677
    %v1860 = vpack.c.bf16 %v1692, %v1687
    %v1861 = vpack.c.bf16 %v1844, %v1843
    %v1862 = vpack.c.bf16 %v1846, %v1845
    %v1863 = vpack.c.bf16 %v1848, %v1847
    %v1864 = vpack.c.bf16 %v1850, %v1849
    %v1865 = vpack.c.bf16 %v1852, %v1851
    %v1866 = vpack.c.bf16 %v1854, %v1853
    %v1867 = vpack.c.bf16 %v1856, %v1855
    %v1868 = vpack.c.bf16 %v1858, %v1857
    %1869 = vmatprep.subr.bf16.mxu0 0
    %1870 = vmatpush1.bf16.msra.mxu0 %v1868
    %1871 = vmatprep.subr.bf16.mxu0 0
    %1872 = vmatpush1.bf16.msra.mxu0 %v1867
    %1873 = vmatprep.subr.bf16.mxu0 0
    %1874 = vmatpush1.bf16.msra.mxu0 %v1866
    %1875 = vmatprep.subr.bf16.mxu0 0
    %1876 = vmatpush1.bf16.msra.mxu0 %v1865
    %1877 = vmatprep.subr.bf16.mxu0 0
    %1878 = vmatpush1.bf16.msra.mxu0 %v1864
    %1879 = vmatprep.subr.bf16.mxu0 0
    %1880 = vmatpush1.bf16.msra.mxu0 %v1863
    %1881 = vmatprep.subr.bf16.mxu0 0
    %1882 = vmatpush1.bf16.msra.mxu0 %v1862
    %1883 = vmatprep.subr.bf16.mxu0 0
    %1884 = vmatpush1.bf16.msra.mxu0 %v1861
    %1885 = vmatprep.subr.bf16.mxu0 0
    %1886 = vmatpush2.bf16.msra.mxu0 0
    %1887 = vmatprep.subr.bf16.mxu0 0
    %1888 = vmatpush2.bf16.msra.mxu0 0
    %1889 = vmatprep.subr.bf16.mxu0 0
    %1890 = vmatpush2.bf16.msra.mxu0 0
    %1891 = vmatprep.subr.bf16.mxu0 0
    %1892 = vmatpush2.bf16.msra.mxu0 0
    %1893 = vmatprep.subr.bf16.mxu0 0
    %1894 = vmatpush2.bf16.msra.mxu0 0
    %1895 = vmatprep.subr.bf16.mxu0 0
    %1896 = vmatpush2.bf16.msra.mxu0 0
    %1897 = vmatprep.subr.bf16.mxu0 0
    %1898 = vmatpush2.bf16.msra.mxu0 0
    %1899 = vmatprep.subr.bf16.mxu0 0
    %1900 = vmatpush2.bf16.msra.mxu0 0
    %1901 = vmatprep.mubr.bf16.mxu0 0
    %1902 = vmatmul.mubr.bf16.gmra.mxu0 %v1859
    %v1903 = vpop.f32.mrf.mxu0
    %v1904 = vadd.f32 0.0, %v1903
    %v1905 = vpop.f32.mrf.mxu0
    %v1906 = vpop.f32.mrf.mxu0
    %v1907 = vadd.f32 0.0, %v1906
    %v1908 = vpop.f32.mrf.mxu0
    %1909 = vmatprep.mubr.bf16.mxu0 0
    %1910 = vmatmul.mubr.bf16.gmra.mxu0 %v1860
    %v1911 = vpop.f32.mrf.mxu0
    %v1912 = vadd.f32 0.0, %v1911
    %v1913 = vpop.f32.mrf.mxu0
    %v1914 = vpop.f32.mrf.mxu0
    %v1915 = vadd.f32 0.0, %v1914
    %v1916 = vpop.f32.mrf.mxu0
    %1917 = vdwg.mxu0
    %1918 = vmatprep.subr.bf16.mxu0 0
    %1919 = vmatpush1.bf16.msra.mxu0 %v1607
    %1920 = vmatprep.subr.bf16.mxu0 0
    %1921 = vmatpush1.bf16.msra.mxu0 %v1606
    %1922 = vmatprep.subr.bf16.mxu0 0
    %1923 = vmatpush1.bf16.msra.mxu0 %v1605
    %1924 = vmatprep.subr.bf16.mxu0 0
    %1925 = vmatpush1.bf16.msra.mxu0 %v1604
    %1926 = vmatprep.subr.bf16.mxu0 0
    %1927 = vmatpush1.bf16.msra.mxu0 %v1603
    %1928 = vmatprep.subr.bf16.mxu0 0
    %1929 = vmatpush1.bf16.msra.mxu0 %v1602
    %1930 = vmatprep.subr.bf16.mxu0 0
    %1931 = vmatpush1.bf16.msra.mxu0 %v1601
    %1932 = vmatprep.subr.bf16.mxu0 0
    %1933 = vmatpush1.bf16.msra.mxu0 %v1600
    %1934 = vmatprep.subr.bf16.mxu0 0
    %1935 = vmatpush2.bf16.msra.mxu0 0
    %1936 = vmatprep.subr.bf16.mxu0 0
    %1937 = vmatpush2.bf16.msra.mxu0 0
    %1938 = vmatprep.subr.bf16.mxu0 0
    %1939 = vmatpush2.bf16.msra.mxu0 0
    %1940 = vmatprep.subr.bf16.mxu0 0
    %1941 = vmatpush2.bf16.msra.mxu0 0
    %1942 = vmatprep.subr.bf16.mxu0 0
    %1943 = vmatpush2.bf16.msra.mxu0 0
    %1944 = vmatprep.subr.bf16.mxu0 0
    %1945 = vmatpush2.bf16.msra.mxu0 0
    %1946 = vmatprep.subr.bf16.mxu0 0
    %1947 = vmatpush2.bf16.msra.mxu0 0
    %1948 = vmatprep.subr.bf16.mxu0 0
    %1949 = vmatpush2.bf16.msra.mxu0 0
    %1950 = vmatprep.mubr.bf16.mxu0 0
    %1951 = vmatmul.mubr.bf16.gmra.mxu0 %v1598
    %v1952 = vpop.f32.mrf.mxu0
    %v1953 = vadd.f32 %v1904, %v1952
    %v1954 = vpop.f32.mrf.mxu0
    %v1955 = vpop.f32.mrf.mxu0
    %v1956 = vadd.f32 %v1907, %v1955
    %v1957 = vpop.f32.mrf.mxu0
    %1958 = vmatprep.mubr.bf16.mxu0 0
    %1959 = vmatmul.mubr.bf16.gmra.mxu0 %v1599
    %v1960 = vpop.f32.mrf.mxu0
    %v1961 = vadd.f32 %v1912, %v1960
    %v1962 = vpop.f32.mrf.mxu0
    %v1963 = vpop.f32.mrf.mxu0
    %v1964 = vadd.f32 %v1915, %v1963
    %v1965 = vpop.f32.mrf.mxu0
    %1966 = vdwg.mxu0
    %s1967 = scalar_lea.vmem %s0, 40
    %v1968 = vld [vmem:[%s1967] sm:$0xff]
    %1969 = vmatprep.subr.mxu0 0.0
    %1970 = vmatpush1.msra.mxu0 0.0
    %1971 = vmatprep.subr.mxu0 0.0
    %1972 = vmatpush1.msra.mxu0 0.0
    %1973 = vmatprep.subr.mxu0 0.0
    %1974 = vmatpush1.msra.mxu0 0.0
    %1975 = vmatprep.subr.mxu0 0.0
    %1976 = vmatpush1.msra.mxu0 0.0
    %1977 = vmatprep.subr.mxu0 0.0
    %1978 = vmatpush1.msra.mxu0 0.0
    %1979 = vmatprep.subr.mxu0 0.0
    %1980 = vmatpush1.msra.mxu0 0.0
    %1981 = vmatprep.subr.mxu0 0.0
    %1982 = vmatpush1.msra.mxu0 0.0
    %1983 = vmatprep.subr.mxu0 0.0
    %1984 = vmatpush1.msra.mxu0 0.0
    %1985 = vmatprep.subr.mxu0 0.0
    %1986 = vmatpush1.msra.mxu0 0.0
    %1987 = vmatprep.subr.mxu0 0.0
    %1988 = vmatpush1.msra.mxu0 0.0
    %1989 = vmatprep.subr.mxu0 0.0
    %1990 = vmatpush1.msra.mxu0 0.0
    %1991 = vmatprep.subr.mxu0 0.0
    %1992 = vmatpush1.msra.mxu0 0.0
    %1993 = vmatprep.subr.mxu0 0.0
    %1994 = vmatpush1.msra.mxu0 0.0
    %1995 = vmatprep.subr.mxu0 0.0
    %1996 = vmatpush1.msra.mxu0 0.0
    %1997 = vmatprep.subr.mxu0 0.0
    %1998 = vmatpush1.msra.mxu0 0.0
    %1999 = vmatprep.subr.mxu0 0.0
    %2000 = vmatpush1.msra.mxu0 %v1968
    %2001 = vmatprep.subr.mxu0 0.0
    %2002 = vmatpush2.msra.mxu0 0.0
    %2003 = vmatprep.subr.mxu0 0.0
    %2004 = vmatpush2.msra.mxu0 0.0
    %2005 = vmatprep.subr.mxu0 0.0
    %2006 = vmatpush2.msra.mxu0 0.0
    %2007 = vmatprep.subr.mxu0 0.0
    %2008 = vmatpush2.msra.mxu0 0.0
    %2009 = vmatprep.subr.mxu0 0.0
    %2010 = vmatpush2.msra.mxu0 0.0
    %2011 = vmatprep.subr.mxu0 0.0
    %2012 = vmatpush2.msra.mxu0 0.0
    %2013 = vmatprep.subr.mxu0 0.0
    %2014 = vmatpush2.msra.mxu0 0.0
    %2015 = vmatprep.subr.mxu0 0.0
    %2016 = vmatpush2.msra.mxu0 0.0
    %2017 = vmatprep.subr.mxu0 0.0
    %2018 = vmatpush2.msra.mxu0 0.0
    %2019 = vmatprep.subr.mxu0 0.0
    %2020 = vmatpush2.msra.mxu0 0.0
    %2021 = vmatprep.subr.mxu0 0.0
    %2022 = vmatpush2.msra.mxu0 0.0
    %2023 = vmatprep.subr.mxu0 0.0
    %2024 = vmatpush2.msra.mxu0 0.0
    %2025 = vmatprep.subr.mxu0 0.0
    %2026 = vmatpush2.msra.mxu0 0.0
    %2027 = vmatprep.subr.mxu0 0.0
    %2028 = vmatpush2.msra.mxu0 0.0
    %2029 = vmatprep.subr.mxu0 0.0
    %2030 = vmatpush2.msra.mxu0 0.0
    %2031 = vmatprep.subr.mxu0 0.0
    %2032 = vmatpush2.msra.mxu0 0.0
    %2033 = vmatprep.mubr.f32.mxu0 0.0
    %2034 = vmatmul.mubr.f32.gmra.mxu0 %v81
    %v2035 = vpop.f32.mrf.mxu0
    %v2036 = vadd.f32 0.0, %v2035
    %v2037 = vpop.f32.mrf.mxu0
    %2038 = vmatprep.mubr.f32.mxu0 0.0
    %2039 = vmatmul.mubr.f32.gmra.mxu0 %v84
    %v2040 = vpop.f32.mrf.mxu0
    %v2041 = vadd.f32 0.0, %v2040
    %v2042 = vpop.f32.mrf.mxu0
    %2043 = vmatprep.mubr.f32.mxu0 0.0
    %2044 = vmatmul.mubr.f32.gmra.mxu0 %v87
    %v2045 = vpop.f32.mrf.mxu0
    %v2046 = vadd.f32 0.0, %v2045
    %v2047 = vpop.f32.mrf.mxu0
    %2048 = vmatprep.mubr.f32.mxu0 0.0
    %2049 = vmatmul.mubr.f32.gmra.mxu0 %v90
    %v2050 = vpop.f32.mrf.mxu0
    %v2051 = vadd.f32 0.0, %v2050
    %v2052 = vpop.f32.mrf.mxu0
    %2053 = vdwg.mxu0
    %v2054 = vlaneseq
    %v2055 = vshrl.u32 %v2054, 7
    %v2056 = vsub.s32 5, %v2055
    %v2057 = vrot.slane %v61, %v2056
    %v2058 = vsub.f32 %v29, %v2057
    %v2059 = vsub.f32 %v30, %v2057
    %v2060 = vsub.f32 %v31, %v2057
    %v2061 = vsub.f32 %v32, %v2057
    %v2062 = vsub.f32 %v33, %v2057
    %v2063 = vsub.f32 %v34, %v2057
    %v2064 = vsub.f32 %v35, %v2057
    %v2065 = vsub.f32 %v36, %v2057
    %v2066 = vsub.f32 %v37, %v2057
    %v2067 = vsub.f32 %v38, %v2057
    %v2068 = vsub.f32 %v39, %v2057
    %v2069 = vsub.f32 %v40, %v2057
    %v2070 = vsub.f32 %v41, %v2057
    %v2071 = vsub.f32 %v42, %v2057
    %v2072 = vsub.f32 %v43, %v2057
    %v2073 = vsub.f32 %v44, %v2057
    %2074 = vmax.xlane.f32.xlu0 %v2058
    %v2075 = vpop.xlane.xlu0 %2074
    %2076 = vmax.xlane.f32.xlu0 %v2059
    %v2077 = vpop.xlane.xlu0 %2076
    %2078 = vmax.xlane.f32.xlu0 %v2060
    %v2079 = vpop.xlane.xlu0 %2078
    %2080 = vmax.xlane.f32.xlu0 %v2061
    %v2081 = vpop.xlane.xlu0 %2080
    %2082 = vmax.xlane.f32.xlu0 %v2062
    %v2083 = vpop.xlane.xlu0 %2082
    %2084 = vmax.xlane.f32.xlu0 %v2063
    %v2085 = vpop.xlane.xlu0 %2084
    %2086 = vmax.xlane.f32.xlu0 %v2064
    %v2087 = vpop.xlane.xlu0 %2086
    %2088 = vmax.xlane.f32.xlu0 %v2065
    %v2089 = vpop.xlane.xlu0 %2088
    %2090 = vmax.xlane.f32.xlu0 %v2066
    %v2091 = vpop.xlane.xlu0 %2090
    %2092 = vmax.xlane.f32.xlu0 %v2067
    %v2093 = vpop.xlane.xlu0 %2092
    %2094 = vmax.xlane.f32.xlu0 %v2068
    %v2095 = vpop.xlane.xlu0 %2094
    %2096 = vmax.xlane.f32.xlu0 %v2069
    %v2097 = vpop.xlane.xlu0 %2096
    %2098 = vmax.xlane.f32.xlu0 %v2070
    %v2099 = vpop.xlane.xlu0 %2098
    %2100 = vmax.xlane.f32.xlu0 %v2071
    %v2101 = vpop.xlane.xlu0 %2100
    %2102 = vmax.xlane.f32.xlu0 %v2072
    %v2103 = vpop.xlane.xlu0 %2102
    %2104 = vmax.xlane.f32.xlu0 %v2073
    %v2105 = vpop.xlane.xlu0 %2104
    %v2106 = vsub.f32 %v2058, %v2075
    %v2107 = vsub.f32 %v2059, %v2077
    %v2108 = vsub.f32 %v2060, %v2079
    %v2109 = vsub.f32 %v2061, %v2081
    %v2110 = vsub.f32 %v2062, %v2083
    %v2111 = vsub.f32 %v2063, %v2085
    %v2112 = vsub.f32 %v2064, %v2087
    %v2113 = vsub.f32 %v2065, %v2089
    %v2114 = vsub.f32 %v2066, %v2091
    %v2115 = vsub.f32 %v2067, %v2093
    %v2116 = vsub.f32 %v2068, %v2095
    %v2117 = vsub.f32 %v2069, %v2097
    %v2118 = vsub.f32 %v2070, %v2099
    %v2119 = vsub.f32 %v2071, %v2101
    %v2120 = vsub.f32 %v2072, %v2103
    %v2121 = vsub.f32 %v2073, %v2105
    %v2122 = vmul.f32 %v2106, 1.442695
    %v2123 = vpow.pop %v2122
    %v2124 = vmul.f32 %v2107, 1.442695
    %v2125 = vpow.pop %v2124
    %v2126 = vmul.f32 %v2108, 1.442695
    %v2127 = vpow.pop %v2126
    %v2128 = vmul.f32 %v2109, 1.442695
    %v2129 = vpow.pop %v2128
    %v2130 = vmul.f32 %v2110, 1.442695
    %v2131 = vpow.pop %v2130
    %v2132 = vmul.f32 %v2111, 1.442695
    %v2133 = vpow.pop %v2132
    %v2134 = vmul.f32 %v2112, 1.442695
    %v2135 = vpow.pop %v2134
    %v2136 = vmul.f32 %v2113, 1.442695
    %v2137 = vpow.pop %v2136
    %v2138 = vmul.f32 %v2114, 1.442695
    %v2139 = vpow.pop %v2138
    %v2140 = vmul.f32 %v2115, 1.442695
    %v2141 = vpow.pop %v2140
    %v2142 = vmul.f32 %v2116, 1.442695
    %v2143 = vpow.pop %v2142
    %v2144 = vmul.f32 %v2117, 1.442695
    %v2145 = vpow.pop %v2144
    %v2146 = vmul.f32 %v2118, 1.442695
    %v2147 = vpow.pop %v2146
    %v2148 = vmul.f32 %v2119, 1.442695
    %v2149 = vpow.pop %v2148
    %v2150 = vmul.f32 %v2120, 1.442695
    %v2151 = vpow.pop %v2150
    %v2152 = vmul.f32 %v2121, 1.442695
    %v2153 = vpow.pop %v2152
    %2154 = vadd.xlane.f32.xlu0 %v2123
    %v2155 = vpop.xlane.xlu0 %2154
    %2156 = vadd.xlane.f32.xlu0 %v2125
    %v2157 = vpop.xlane.xlu0 %2156
    %2158 = vadd.xlane.f32.xlu0 %v2127
    %v2159 = vpop.xlane.xlu0 %2158
    %2160 = vadd.xlane.f32.xlu0 %v2129
    %v2161 = vpop.xlane.xlu0 %2160
    %2162 = vadd.xlane.f32.xlu0 %v2131
    %v2163 = vpop.xlane.xlu0 %2162
    %2164 = vadd.xlane.f32.xlu0 %v2133
    %v2165 = vpop.xlane.xlu0 %2164
    %2166 = vadd.xlane.f32.xlu0 %v2135
    %v2167 = vpop.xlane.xlu0 %2166
    %2168 = vadd.xlane.f32.xlu0 %v2137
    %v2169 = vpop.xlane.xlu0 %2168
    %2170 = vadd.xlane.f32.xlu0 %v2139
    %v2171 = vpop.xlane.xlu0 %2170
    %2172 = vadd.xlane.f32.xlu0 %v2141
    %v2173 = vpop.xlane.xlu0 %2172
    %2174 = vadd.xlane.f32.xlu0 %v2143
    %v2175 = vpop.xlane.xlu0 %2174
    %2176 = vadd.xlane.f32.xlu0 %v2145
    %v2177 = vpop.xlane.xlu0 %2176
    %2178 = vadd.xlane.f32.xlu0 %v2147
    %v2179 = vpop.xlane.xlu0 %2178
    %2180 = vadd.xlane.f32.xlu0 %v2149
    %v2181 = vpop.xlane.xlu0 %2180
    %2182 = vadd.xlane.f32.xlu0 %v2151
    %v2183 = vpop.xlane.xlu0 %2182
    %2184 = vadd.xlane.f32.xlu0 %v2153
    %v2185 = vpop.xlane.xlu0 %2184
    %v2186 = vrcp.pop %v2155
    %v2187 = vrcp.pop %v2157
    %v2188 = vrcp.pop %v2159
    %v2189 = vrcp.pop %v2161
    %v2190 = vrcp.pop %v2163
    %v2191 = vrcp.pop %v2165
    %v2192 = vrcp.pop %v2167
    %v2193 = vrcp.pop %v2169
    %v2194 = vrcp.pop %v2171
    %v2195 = vrcp.pop %v2173
    %v2196 = vrcp.pop %v2175
    %v2197 = vrcp.pop %v2177
    %v2198 = vrcp.pop %v2179
    %v2199 = vrcp.pop %v2181
    %v2200 = vrcp.pop %v2183
    %v2201 = vrcp.pop %v2185
    %v2202 = vmul.f32 %v2123, %v2186
    %v2203 = vmul.f32 %v2125, %v2187
    %v2204 = vmul.f32 %v2127, %v2188
    %v2205 = vmul.f32 %v2129, %v2189
    %v2206 = vmul.f32 %v2131, %v2190
    %v2207 = vmul.f32 %v2133, %v2191
    %v2208 = vmul.f32 %v2135, %v2192
    %v2209 = vmul.f32 %v2137, %v2193
    %v2210 = vmul.f32 %v2139, %v2194
    %v2211 = vmul.f32 %v2141, %v2195
    %v2212 = vmul.f32 %v2143, %v2196
    %v2213 = vmul.f32 %v2145, %v2197
    %v2214 = vmul.f32 %v2147, %v2198
    %v2215 = vmul.f32 %v2149, %v2199
    %v2216 = vmul.f32 %v2151, %v2200
    %v2217 = vmul.f32 %v2153, %v2201
    %v2218 = vpack.c.bf16 %v2041, %v2036
    %v2219 = vpack.c.bf16 %v2051, %v2046
    %v2220 = vpack.c.bf16 %v2203, %v2202
    %v2221 = vpack.c.bf16 %v2205, %v2204
    %v2222 = vpack.c.bf16 %v2207, %v2206
    %v2223 = vpack.c.bf16 %v2209, %v2208
    %v2224 = vpack.c.bf16 %v2211, %v2210
    %v2225 = vpack.c.bf16 %v2213, %v2212
    %v2226 = vpack.c.bf16 %v2215, %v2214
    %v2227 = vpack.c.bf16 %v2217, %v2216
    %2228 = vmatprep.subr.bf16.mxu0 0
    %2229 = vmatpush1.bf16.msra.mxu0 %v2227
    %2230 = vmatprep.subr.bf16.mxu0 0
    %2231 = vmatpush1.bf16.msra.mxu0 %v2226
    %2232 = vmatprep.subr.bf16.mxu0 0
    %2233 = vmatpush1.bf16.msra.mxu0 %v2225
    %2234 = vmatprep.subr.bf16.mxu0 0
    %2235 = vmatpush1.bf16.msra.mxu0 %v2224
    %2236 = vmatprep.subr.bf16.mxu0 0
    %2237 = vmatpush1.bf16.msra.mxu0 %v2223
    %2238 = vmatprep.subr.bf16.mxu0 0
    %2239 = vmatpush1.bf16.msra.mxu0 %v2222
    %2240 = vmatprep.subr.bf16.mxu0 0
    %2241 = vmatpush1.bf16.msra.mxu0 %v2221
    %2242 = vmatprep.subr.bf16.mxu0 0
    %2243 = vmatpush1.bf16.msra.mxu0 %v2220
    %2244 = vmatprep.subr.bf16.mxu0 0
    %2245 = vmatpush2.bf16.msra.mxu0 0
    %2246 = vmatprep.subr.bf16.mxu0 0
    %2247 = vmatpush2.bf16.msra.mxu0 0
    %2248 = vmatprep.subr.bf16.mxu0 0
    %2249 = vmatpush2.bf16.msra.mxu0 0
    %2250 = vmatprep.subr.bf16.mxu0 0
    %2251 = vmatpush2.bf16.msra.mxu0 0
    %2252 = vmatprep.subr.bf16.mxu0 0
    %2253 = vmatpush2.bf16.msra.mxu0 0
    %2254 = vmatprep.subr.bf16.mxu0 0
    %2255 = vmatpush2.bf16.msra.mxu0 0
    %2256 = vmatprep.subr.bf16.mxu0 0
    %2257 = vmatpush2.bf16.msra.mxu0 0
    %2258 = vmatprep.subr.bf16.mxu0 0
    %2259 = vmatpush2.bf16.msra.mxu0 0
    %2260 = vmatprep.mubr.bf16.mxu0 0
    %2261 = vmatmul.mubr.bf16.gmra.mxu0 %v2218
    %v2262 = vpop.f32.mrf.mxu0
    %v2263 = vadd.f32 0.0, %v2262
    %v2264 = vpop.f32.mrf.mxu0
    %v2265 = vpop.f32.mrf.mxu0
    %v2266 = vadd.f32 0.0, %v2265
    %v2267 = vpop.f32.mrf.mxu0
    %2268 = vmatprep.mubr.bf16.mxu0 0
    %2269 = vmatmul.mubr.bf16.gmra.mxu0 %v2219
    %v2270 = vpop.f32.mrf.mxu0
    %v2271 = vadd.f32 0.0, %v2270
    %v2272 = vpop.f32.mrf.mxu0
    %v2273 = vpop.f32.mrf.mxu0
    %v2274 = vadd.f32 0.0, %v2273
    %v2275 = vpop.f32.mrf.mxu0
    %2276 = vdwg.mxu0
    %v2277 = vadd.f32 %v1953, %v2263
    %v2278 = vadd.f32 %v1956, %v2266
    %v2279 = vadd.f32 %v1961, %v2271
    %v2280 = vadd.f32 %v1964, %v2274
    %2281 = vset.pattern.permute.xlu0 1
    %2282 = vperm.xlu0 %2281, %v62
    %v2283 = vpop.permute.xlu0 %2282
    %2285 = vset.pattern.permute.xlu0 1
    %2286 = vperm.xlu0 %2285, %v63
    %v2287 = vpop.permute.xlu0 %2286
    %2289 = vset.pattern.permute.xlu0 1
    %2290 = vperm.xlu0 %2289, %v64
    %v2291 = vpop.permute.xlu0 %2290
    %2293 = vset.pattern.permute.xlu0 1
    %2294 = vperm.xlu0 %2293, %v65
    %v2295 = vpop.permute.xlu0 %2294
    %2297 = vset.pattern.permute.xlu0 1
    %2298 = vperm.xlu0 %2297, %v66
    %v2299 = vpop.permute.xlu0 %2298
    %2301 = vset.pattern.permute.xlu0 1
    %2302 = vperm.xlu0 %2301, %v67
    %v2303 = vpop.permute.xlu0 %2302
    %2305 = vset.pattern.permute.xlu0 1
    %2306 = vperm.xlu0 %2305, %v68
    %v2307 = vpop.permute.xlu0 %2306
    %2309 = vset.pattern.permute.xlu0 1
    %2310 = vperm.xlu0 %2309, %v69
    %v2311 = vpop.permute.xlu0 %2310
    %2313 = vset.pattern.permute.xlu0 1
    %2314 = vperm.xlu0 %2313, %v70
    %v2315 = vpop.permute.xlu0 %2314
    %2317 = vset.pattern.permute.xlu0 1
    %2318 = vperm.xlu0 %2317, %v71
    %v2319 = vpop.permute.xlu0 %2318
    %2321 = vset.pattern.permute.xlu0 1
    %2322 = vperm.xlu0 %2321, %v72
    %v2323 = vpop.permute.xlu0 %2322
    %2325 = vset.pattern.permute.xlu0 1
    %2326 = vperm.xlu0 %2325, %v73
    %v2327 = vpop.permute.xlu0 %2326
    %2329 = vset.pattern.permute.xlu0 1
    %2330 = vperm.xlu0 %2329, %v74
    %v2331 = vpop.permute.xlu0 %2330
    %2333 = vset.pattern.permute.xlu0 1
    %2334 = vperm.xlu0 %2333, %v75
    %v2335 = vpop.permute.xlu0 %2334
    %2337 = vset.pattern.permute.xlu0 1
    %2338 = vperm.xlu0 %2337, %v76
    %v2339 = vpop.permute.xlu0 %2338
    %2341 = vset.pattern.permute.xlu0 1
    %2342 = vperm.xlu0 %2341, %v77
    %v2343 = vpop.permute.xlu0 %2342
    %v2345 = vsub.f32 %v45, %v2283
    %v2346 = vsub.f32 %v46, %v2287
    %v2347 = vsub.f32 %v47, %v2291
    %v2348 = vsub.f32 %v48, %v2295
    %v2349 = vsub.f32 %v49, %v2299
    %v2350 = vsub.f32 %v50, %v2303
    %v2351 = vsub.f32 %v51, %v2307
    %v2352 = vsub.f32 %v52, %v2311
    %v2353 = vsub.f32 %v53, %v2315
    %v2354 = vsub.f32 %v54, %v2319
    %v2355 = vsub.f32 %v55, %v2323
    %v2356 = vsub.f32 %v56, %v2327
    %v2357 = vsub.f32 %v57, %v2331
    %v2358 = vsub.f32 %v58, %v2335
    %v2359 = vsub.f32 %v59, %v2339
    %v2360 = vsub.f32 %v60, %v2343
    %2361 = vmax.xlane.f32.xlu0 %v2345
    %v2362 = vpop.xlane.xlu0 %2361
    %2363 = vmax.xlane.f32.xlu0 %v2346
    %v2364 = vpop.xlane.xlu0 %2363
    %2365 = vmax.xlane.f32.xlu0 %v2347
    %v2366 = vpop.xlane.xlu0 %2365
    %2367 = vmax.xlane.f32.xlu0 %v2348
    %v2368 = vpop.xlane.xlu0 %2367
    %2369 = vmax.xlane.f32.xlu0 %v2349
    %v2370 = vpop.xlane.xlu0 %2369
    %2371 = vmax.xlane.f32.xlu0 %v2350
    %v2372 = vpop.xlane.xlu0 %2371
    %2373 = vmax.xlane.f32.xlu0 %v2351
    %v2374 = vpop.xlane.xlu0 %2373
    %2375 = vmax.xlane.f32.xlu0 %v2352
    %v2376 = vpop.xlane.xlu0 %2375
    %2377 = vmax.xlane.f32.xlu0 %v2353
    %v2378 = vpop.xlane.xlu0 %2377
    %2379 = vmax.xlane.f32.xlu0 %v2354
    %v2380 = vpop.xlane.xlu0 %2379
    %2381 = vmax.xlane.f32.xlu0 %v2355
    %v2382 = vpop.xlane.xlu0 %2381
    %2383 = vmax.xlane.f32.xlu0 %v2356
    %v2384 = vpop.xlane.xlu0 %2383
    %2385 = vmax.xlane.f32.xlu0 %v2357
    %v2386 = vpop.xlane.xlu0 %2385
    %2387 = vmax.xlane.f32.xlu0 %v2358
    %v2388 = vpop.xlane.xlu0 %2387
    %2389 = vmax.xlane.f32.xlu0 %v2359
    %v2390 = vpop.xlane.xlu0 %2389
    %2391 = vmax.xlane.f32.xlu0 %v2360
    %v2392 = vpop.xlane.xlu0 %2391
    %v2393 = vsub.f32 %v2345, %v2362
    %v2394 = vsub.f32 %v2346, %v2364
    %v2395 = vsub.f32 %v2347, %v2366
    %v2396 = vsub.f32 %v2348, %v2368
    %v2397 = vsub.f32 %v2349, %v2370
    %v2398 = vsub.f32 %v2350, %v2372
    %v2399 = vsub.f32 %v2351, %v2374
    %v2400 = vsub.f32 %v2352, %v2376
    %v2401 = vsub.f32 %v2353, %v2378
    %v2402 = vsub.f32 %v2354, %v2380
    %v2403 = vsub.f32 %v2355, %v2382
    %v2404 = vsub.f32 %v2356, %v2384
    %v2405 = vsub.f32 %v2357, %v2386
    %v2406 = vsub.f32 %v2358, %v2388
    %v2407 = vsub.f32 %v2359, %v2390
    %v2408 = vsub.f32 %v2360, %v2392
    %v2409 = vmul.f32 %v2393, 1.442695
    %v2410 = vpow.pop %v2409
    %v2411 = vmul.f32 %v2394, 1.442695
    %v2412 = vpow.pop %v2411
    %v2413 = vmul.f32 %v2395, 1.442695
    %v2414 = vpow.pop %v2413
    %v2415 = vmul.f32 %v2396, 1.442695
    %v2416 = vpow.pop %v2415
    %v2417 = vmul.f32 %v2397, 1.442695
    %v2418 = vpow.pop %v2417
    %v2419 = vmul.f32 %v2398, 1.442695
    %v2420 = vpow.pop %v2419
    %v2421 = vmul.f32 %v2399, 1.442695
    %v2422 = vpow.pop %v2421
    %v2423 = vmul.f32 %v2400, 1.442695
    %v2424 = vpow.pop %v2423
    %v2425 = vmul.f32 %v2401, 1.442695
    %v2426 = vpow.pop %v2425
    %v2427 = vmul.f32 %v2402, 1.442695
    %v2428 = vpow.pop %v2427
    %v2429 = vmul.f32 %v2403, 1.442695
    %v2430 = vpow.pop %v2429
    %v2431 = vmul.f32 %v2404, 1.442695
    %v2432 = vpow.pop %v2431
    %v2433 = vmul.f32 %v2405, 1.442695
    %v2434 = vpow.pop %v2433
    %v2435 = vmul.f32 %v2406, 1.442695
    %v2436 = vpow.pop %v2435
    %v2437 = vmul.f32 %v2407, 1.442695
    %v2438 = vpow.pop %v2437
    %v2439 = vmul.f32 %v2408, 1.442695
    %v2440 = vpow.pop %v2439
    %2441 = vadd.xlane.f32.xlu0 %v2410
    %v2442 = vpop.xlane.xlu0 %2441
    %2443 = vadd.xlane.f32.xlu0 %v2412
    %v2444 = vpop.xlane.xlu0 %2443
    %2445 = vadd.xlane.f32.xlu0 %v2414
    %v2446 = vpop.xlane.xlu0 %2445
    %2447 = vadd.xlane.f32.xlu0 %v2416
    %v2448 = vpop.xlane.xlu0 %2447
    %2449 = vadd.xlane.f32.xlu0 %v2418
    %v2450 = vpop.xlane.xlu0 %2449
    %2451 = vadd.xlane.f32.xlu0 %v2420
    %v2452 = vpop.xlane.xlu0 %2451
    %2453 = vadd.xlane.f32.xlu0 %v2422
    %v2454 = vpop.xlane.xlu0 %2453
    %2455 = vadd.xlane.f32.xlu0 %v2424
    %v2456 = vpop.xlane.xlu0 %2455
    %2457 = vadd.xlane.f32.xlu0 %v2426
    %v2458 = vpop.xlane.xlu0 %2457
    %2459 = vadd.xlane.f32.xlu0 %v2428
    %v2460 = vpop.xlane.xlu0 %2459
    %2461 = vadd.xlane.f32.xlu0 %v2430
    %v2462 = vpop.xlane.xlu0 %2461
    %2463 = vadd.xlane.f32.xlu0 %v2432
    %v2464 = vpop.xlane.xlu0 %2463
    %2465 = vadd.xlane.f32.xlu0 %v2434
    %v2466 = vpop.xlane.xlu0 %2465
    %2467 = vadd.xlane.f32.xlu0 %v2436
    %v2468 = vpop.xlane.xlu0 %2467
    %2469 = vadd.xlane.f32.xlu0 %v2438
    %v2470 = vpop.xlane.xlu0 %2469
    %2471 = vadd.xlane.f32.xlu0 %v2440
    %v2472 = vpop.xlane.xlu0 %2471
    %v2473 = vrcp.pop %v2442
    %v2474 = vrcp.pop %v2444
    %v2475 = vrcp.pop %v2446
    %v2476 = vrcp.pop %v2448
    %v2477 = vrcp.pop %v2450
    %v2478 = vrcp.pop %v2452
    %v2479 = vrcp.pop %v2454
    %v2480 = vrcp.pop %v2456
    %v2481 = vrcp.pop %v2458
    %v2482 = vrcp.pop %v2460
    %v2483 = vrcp.pop %v2462
    %v2484 = vrcp.pop %v2464
    %v2485 = vrcp.pop %v2466
    %v2486 = vrcp.pop %v2468
    %v2487 = vrcp.pop %v2470
    %v2488 = vrcp.pop %v2472
    %v2489 = vmul.f32 %v2410, %v2473
    %v2490 = vmul.f32 %v2412, %v2474
    %v2491 = vmul.f32 %v2414, %v2475
    %v2492 = vmul.f32 %v2416, %v2476
    %v2493 = vmul.f32 %v2418, %v2477
    %v2494 = vmul.f32 %v2420, %v2478
    %v2495 = vmul.f32 %v2422, %v2479
    %v2496 = vmul.f32 %v2424, %v2480
    %v2497 = vmul.f32 %v2426, %v2481
    %v2498 = vmul.f32 %v2428, %v2482
    %v2499 = vmul.f32 %v2430, %v2483
    %v2500 = vmul.f32 %v2432, %v2484
    %v2501 = vmul.f32 %v2434, %v2485
    %v2502 = vmul.f32 %v2436, %v2486
    %v2503 = vmul.f32 %v2438, %v2487
    %v2504 = vmul.f32 %v2440, %v2488
    %v2505 = vpack.c.bf16 %v2278, %v2277
    %v2506 = vpack.c.bf16 %v2280, %v2279
    %v2507 = vpack.c.bf16 %v2490, %v2489
    %v2508 = vpack.c.bf16 %v2492, %v2491
    %v2509 = vpack.c.bf16 %v2494, %v2493
    %v2510 = vpack.c.bf16 %v2496, %v2495
    %v2511 = vpack.c.bf16 %v2498, %v2497
    %v2512 = vpack.c.bf16 %v2500, %v2499
    %v2513 = vpack.c.bf16 %v2502, %v2501
    %v2514 = vpack.c.bf16 %v2504, %v2503
    %2515 = vmatprep.subr.bf16.mxu0 0
    %2516 = vmatpush1.bf16.msra.mxu0 %v2514
    %2517 = vmatprep.subr.bf16.mxu0 0
    %2518 = vmatpush1.bf16.msra.mxu0 %v2513
    %2519 = vmatprep.subr.bf16.mxu0 0
    %2520 = vmatpush1.bf16.msra.mxu0 %v2512
    %2521 = vmatprep.subr.bf16.mxu0 0
    %2522 = vmatpush1.bf16.msra.mxu0 %v2511
    %2523 = vmatprep.subr.bf16.mxu0 0
    %2524 = vmatpush1.bf16.msra.mxu0 %v2510
    %2525 = vmatprep.subr.bf16.mxu0 0
    %2526 = vmatpush1.bf16.msra.mxu0 %v2509
    %2527 = vmatprep.subr.bf16.mxu0 0
    %2528 = vmatpush1.bf16.msra.mxu0 %v2508
    %2529 = vmatprep.subr.bf16.mxu0 0
    %2530 = vmatpush1.bf16.msra.mxu0 %v2507
    %2531 = vmatprep.subr.bf16.mxu0 0
    %2532 = vmatpush2.bf16.msra.mxu0 0
    %2533 = vmatprep.subr.bf16.mxu0 0
    %2534 = vmatpush2.bf16.msra.mxu0 0
    %2535 = vmatprep.subr.bf16.mxu0 0
    %2536 = vmatpush2.bf16.msra.mxu0 0
    %2537 = vmatprep.subr.bf16.mxu0 0
    %2538 = vmatpush2.bf16.msra.mxu0 0
    %2539 = vmatprep.subr.bf16.mxu0 0
    %2540 = vmatpush2.bf16.msra.mxu0 0
    %2541 = vmatprep.subr.bf16.mxu0 0
    %2542 = vmatpush2.bf16.msra.mxu0 0
    %2543 = vmatprep.subr.bf16.mxu0 0
    %2544 = vmatpush2.bf16.msra.mxu0 0
    %2545 = vmatprep.subr.bf16.mxu0 0
    %2546 = vmatpush2.bf16.msra.mxu0 0
    %2547 = vmatprep.mubr.bf16.mxu0 0
    %2548 = vmatmul.mubr.bf16.gmra.mxu0 %v2505
    %v2549 = vpop.f32.mrf.mxu0
    %v2550 = vadd.f32 0.0, %v2549
    %v2551 = vpop.f32.mrf.mxu0
    %v2552 = vpop.f32.mrf.mxu0
    %v2553 = vadd.f32 0.0, %v2552
    %v2554 = vpop.f32.mrf.mxu0
    %2555 = vmatprep.mubr.bf16.mxu0 0
    %2556 = vmatmul.mubr.bf16.gmra.mxu0 %v2506
    %v2557 = vpop.f32.mrf.mxu0
    %v2558 = vadd.f32 0.0, %v2557
    %v2559 = vpop.f32.mrf.mxu0
    %v2560 = vpop.f32.mrf.mxu0
    %v2561 = vadd.f32 0.0, %v2560
    %v2562 = vpop.f32.mrf.mxu0
    %2563 = vdwg.mxu0
    %v2564 = vsub.f32 0.0, %v2550
    %v2565 = vsub.f32 0.0, %v2553
    %v2566 = vsub.f32 0.0, %v2558
    %v2567 = vsub.f32 0.0, %v2561
    %v2568 = vmul.f32 %v2564, 1.442695
    %v2569 = vpow.pop %v2568
    %v2570 = vmul.f32 %v2565, 1.442695
    %v2571 = vpow.pop %v2570
    %v2572 = vmul.f32 %v2566, 1.442695
    %v2573 = vpow.pop %v2572
    %v2574 = vmul.f32 %v2567, 1.442695
    %v2575 = vpow.pop %v2574
    %v2576 = vadd.f32 %v2569, 1.0
    %v2577 = vadd.f32 %v2571, 1.0
    %v2578 = vadd.f32 %v2573, 1.0
    %v2579 = vadd.f32 %v2575, 1.0
    %v2580 = vrcp.pop %v2576
    %v2581 = vrcp.pop %v2577
    %v2582 = vrcp.pop %v2578
    %v2583 = vrcp.pop %v2579
    %s2584 = scalar_lea.vmem [#allocation2], 32
    %2585 = vst [vmem:[%s2584] sm:$0xff] %v2580
    %2586 = vst [vmem:[%s2584 + $0x8] sm:$0xff] %v2581
    %2587 = vst [vmem:[%s2584 + $0x10] sm:$0xff] %v2582
    %2588 = vst [vmem:[%s2584 + $0x18] sm:$0xff] %v2583
    // Predicated region
    $region26: #{smn_forward.1} parent=1 // pred_check
      _
    $region27: #{smn_forward.1} parent=1 // pred_check_branch
      %2590 = sbr.rel (0) target = $region29
    $region28: #{smn_forward.1} parent=1 // pred_region
      %s2592 = ssub.s32 1024, 1024
      %2593 = vsyncadd [#allocation3], %s2592
      %s2594 = sshll.u32 [#allocation2], 4
      %s2595 = int_to_ptr.vmem [resolvable:$true] %s2594
      %2600 = dma.vmem_to_hbm [thread:$0]  %s2595, 1024, %s6, [#allocation3], 128, 128, 8
    $region29: #{smn_forward.1} parent=1 // pred_fallthru
      _
    // Predicated region
    $region30: #{smn_forward.1} parent=1 // pred_check
      _
    $region31: #{smn_forward.1} parent=1 // pred_check_branch
      %2602 = sbr.rel (0) target = $region33
    $region32: #{smn_forward.1} parent=1 // pred_region
      %2603 = dma.done [#allocation3], 1024
    $region33: #{smn_forward.1} parent=1 // pred_fallthru
      _
    %2604 = vsyncpa [#allocation3], 1

</llo_original>
